<compile_context>
chip_gen: v5e
topology: v5e:2x2
jax: 0.10.0
libtpu: 0.0.40
codegen_flags: <defaults>
</compile_context>

<pallas_src>
import functools
import math

import jax
import jax.numpy as jnp
from jax.experimental import pallas as pl
from jax.experimental.pallas import tpu as pltpu

_NEG_INF = -1e30


def _round_up(x, m):
    return (x + m - 1) // m * m


def _vmem_capacity_bytes(default=64 << 20):
    """Generation-aware VMEM capacity (64 MiB/TC on v7x, 128 MiB on v5e/v6e)."""
    try:
        cap = getattr(pltpu.get_tpu_info(), "vmem_capacity_bytes", None)
        if cap:
            return int(cap)
    except Exception:
        pass
    return default


def _spec(shape, index_map, buffers=None):
    """BlockSpec with optional pipeline depth; falls back if unsupported."""
    if buffers is None:
        return pl.BlockSpec(shape, index_map)
    try:
        return pl.BlockSpec(shape, index_map, pipeline_mode=pl.Buffered(buffers))
    except Exception:
        return pl.BlockSpec(shape, index_map)


def _pick_tile_b(B, dtype, tile_b=None):
    """Batch tile: big enough to feed the MXU, >=16 for packed bf16 tiles, and
    split into >=2 parallel steps when the batch allows (v7x has 2 TCs)."""
    align = 16 if dtype == jnp.bfloat16 else 8
    if tile_b is not None:
        tb = max(align, _round_up(tile_b, align))
    else:
        bp = _round_up(B, align)
        tb = min(bp, 128)
        if tb == bp and bp >= 4 * align:
            tb = _round_up((bp + 1) // 2, align)
    Bp = _round_up(B, tb)
    return tb, Bp


# ----------------------------- Pallas kernel ------------------------------ #
def decoder_kernel(emb_ref, h0_ref, enc_ref,
                   wa_h_ref, wa_e_ref, wa_vb_ref,
                   w_gi_ref, w_h_ref, b_g_ref,
                   w_out_ref, b_o_ref,
                   logp_ref, h_new_ref,
                   xo_ref, m_ref, s_ref, *, approx_recip):
    f32 = jnp.float32
    cd = emb_ref.dtype                         # compute dtype for MXU operands
    j = pl.program_id(1)                       # vocab-tile index (arbitrary axis)
    nv = pl.num_programs(1)

    # ------ attention + GRU: once per batch tile (first vocab tile) -------
    @pl.when(j == 0)
    def _():
        emb = emb_ref[...]                     # (tb, Ep)
        h0 = h0_ref[...]                       # (tb, Hp)  padded cols = 0
        enc = enc_ref[...]                     # (tb, S, Hp) padded cols = 0
        tb, S, Hp = enc.shape
        h0_f = h0.astype(f32)

        wvb = wa_vb_ref[...]                   # (2, Hp): row0 = wa_b, row1 = va
        wa_b = wvb[0:1, :]
        va = wvb[1:2, :]

        # energies = relu([h0 ; enc] @ Wa^T + b); concat split into two dots
        part_h = jnp.dot(h0, wa_h_ref[...], preferred_element_type=f32)       # (tb, Hp)
        part_e = jnp.dot(enc.reshape(tb * S, Hp), wa_e_ref[...],
                         preferred_element_type=f32).reshape(tb, S, Hp)       # (tb, S, Hp)
        energies = jnp.maximum(
            part_h[:, None, :] + part_e + wa_b[None, :, :], 0.0)

        # score = va . energies -> softmax over S (padded H cols have va = 0)
        scores = jnp.sum(energies * va[None, :, :], axis=-1)                  # (tb, S)
        s_max = jnp.max(scores, axis=-1, keepdims=True)
        s_exp = jnp.exp(scores - s_max)
        denom = jnp.sum(s_exp, axis=-1, keepdims=True)
        if approx_recip:
            attn = s_exp * pl.reciprocal(denom, approx=True)
        else:
            attn = s_exp / denom                                              # (tb, S)

        # context: VPU weighted sum; product stays in compute dtype (no f32
        # copy of the (tb,S,Hp) encoder block), accumulation in f32.
        context = jnp.sum(attn.astype(cd)[:, :, None] * enc, axis=1,
                          dtype=f32)                                          # (tb, Hp)
        context_c = context.astype(cd)

        # single-step GRU; the six gate matmuls are two stacked MXU dots.
        x_in = jnp.concatenate([emb, context_c], axis=1)                      # (tb, Ep+Hp)
        bg = b_g_ref[...]                                                     # (2, 3Hp)
        gi = jnp.dot(x_in, w_gi_ref[...], preferred_element_type=f32) + bg[0:1, :]
        gh = jnp.dot(h0, w_h_ref[...], preferred_element_type=f32) + bg[1:2, :]

        r = jax.nn.sigmoid(gi[:, :Hp] + gh[:, :Hp])
        z = jax.nn.sigmoid(gi[:, Hp:2 * Hp] + gh[:, Hp:2 * Hp])
        n = jnp.tanh(gi[:, 2 * Hp:] + r * gh[:, 2 * Hp:])
        h_new = (1.0 - z) * n + z * h0_f                                      # (tb, Hp)

        h_new_ref[...] = h_new
        xo_ref[...] = jnp.concatenate([h_new.astype(cd), context_c], axis=1)  # (tb, 2Hp)
        m_ref[...] = jnp.full(m_ref.shape, _NEG_INF, f32)
        s_ref[...] = jnp.zeros(s_ref.shape, f32)

    # ------ streamed output projection over vocab tiles + online LSE -------
    # padded vocab columns carry bias = -1e30 so they vanish from the LSE
    logits = (jnp.dot(xo_ref[...], w_out_ref[...], preferred_element_type=f32)
              + b_o_ref[...])                                                 # (tb, tn)
    m_prev = m_ref[...]
    m_new = jnp.maximum(m_prev, jnp.max(logits, axis=-1, keepdims=True))
    s_ref[...] = (s_ref[...] * jnp.exp(m_prev - m_new)
                  + jnp.sum(jnp.exp(logits - m_new), axis=-1, keepdims=True))
    m_ref[...] = m_new
    logp_ref[:, pl.ds(j, 1), :] = logits[:, None, :].astype(logp_ref.dtype)

    @pl.when(j == nv - 1)
    def _():
        lse = (m_ref[...] + jnp.log(s_ref[...]))[:, :, None]                  # (tb,1,1)
        logp_ref[...] = (logp_ref[...].astype(f32) - lse).astype(logp_ref.dtype)


# ------------------------- one-time preparation ---------------------------- #
def prepare_params(params, dtype=jnp.float32, v_tile=None):
    """Transpose / stack / pad weights into the kernel layout. Run ONCE."""
    H = params['w_hh'].shape[1]
    E = params['embedding'].shape[1]
    V = params['w_out'].shape[0]
    Hp = _round_up(H, 128)
    Ep = _round_up(E, 128)

    if v_tile is None:
        # generation-aware vocab tile: smaller on v7x (64 MiB VMEM per TC)
        v_tile = 512 if _vmem_capacity_bytes() <= (64 << 20) else 1024
    tn = min(_round_up(v_tile, 128), _round_up(V, 128))
    Vp = _round_up(V, tn)

    def pad2(a, r, c):
        return jnp.pad(a, ((0, r - a.shape[0]), (0, c - a.shape[1])))

    # attention: torch Linear weight (H, 2H), input columns = [h ; enc]
    wa_w = params['wa_w']
    wa_h = pad2(wa_w[:, :H].T, Hp, Hp)                       # (Hp, Hp)
    wa_e = pad2(wa_w[:, H:].T, Hp, Hp)                       # (Hp, Hp)
    wa_vb = jnp.concatenate(
        [pad2(params['wa_b'].reshape(1, H), 1, Hp),
         pad2(params['va'].reshape(1, H), 1, Hp)], axis=0)   # (2, Hp)

    # GRU: w_ih (3H, E+H) input cols = [emb ; context]; w_hh (3H, H)
    w_ih, w_hh = params['w_ih'], params['w_hh']
    b_ih, b_hh = params['b_ih'], params['b_hh']

    def gate(w, g):
        return w[g * H:(g + 1) * H]

    w_ge = jnp.concatenate([pad2(gate(w_ih, g)[:, :E].T, Ep, Hp) for g in range(3)], axis=1)
    w_gc = jnp.concatenate([pad2(gate(w_ih, g)[:, E:].T, Hp, Hp) for g in range(3)], axis=1)
    w_gi = jnp.concatenate([w_ge, w_gc], axis=0)                          # (Ep+Hp, 3Hp)
    w_h = jnp.concatenate([pad2(gate(w_hh, g).T, Hp, Hp) for g in range(3)], axis=1)
    b_g = jnp.concatenate([
        jnp.concatenate([pad2(b_ih[g * H:(g + 1) * H].reshape(1, H), 1, Hp)
                         for g in range(3)], axis=1),
        jnp.concatenate([pad2(b_hh[g * H:(g + 1) * H].reshape(1, H), 1, Hp)
                         for g in range(3)], axis=1)], axis=0)            # (2, 3Hp)

    # output projection (V, 2H), input cols = [h_new ; context] -> stacked rows
    w_out, b_out = params['w_out'], params['b_out']
    w_out_s = jnp.concatenate([pad2(w_out[:, :H].T, Hp, Vp),
                               pad2(w_out[:, H:].T, Hp, Vp)], axis=0)     # (2Hp, Vp)
    b_o = jnp.full((1, Vp), _NEG_INF, jnp.float32).at[0, :V].set(b_out)

    cast = lambda a: a.astype(dtype)
    return {
        'H': H, 'Hp': Hp, 'E': E, 'Ep': Ep, 'V': V, 'Vp': Vp, 'tn': tn,
        'dtype': dtype,
        'embedding': cast(pad2(params['embedding'],
                               params['embedding'].shape[0], Ep)),
        'wa_h': cast(wa_h), 'wa_e': cast(wa_e),
        'wa_vb': wa_vb.astype(jnp.float32),
        'w_gi': cast(w_gi), 'w_h': cast(w_h), 'b_g': b_g.astype(jnp.float32),
        'w_out': cast(w_out_s), 'b_o': b_o,
    }


def prepare_encoder_outputs(keycode_enc_outputs, prep, tile_b=None):
    """(S, B, H) time-major -> (Bp, S, Hp) batch-major kernel layout, batch and
    feature padded ONCE per decoded sequence (not once per decode step)."""
    S, B, H = keycode_enc_outputs.shape
    _, Bp = _pick_tile_b(B, prep['dtype'], tile_b)
    enc = jnp.transpose(keycode_enc_outputs, (1, 0, 2))
    enc = jnp.pad(enc, ((0, Bp - B), (0, 0), (0, prep['Hp'] - H)))
    return enc.astype(prep['dtype'])


# ----------------------------- per-step wrapper ----------------------------- #
def decoder_step(inputs, last_hidden, enc_prepared, prep, *, tile_b=None,
                 proj_buffers=2, approx_recip=None, logp_dtype=jnp.float32):
    """inputs: (B,) int32; last_hidden: (1, B, H); enc_prepared: (Bp, S, Hp)."""
    H, Hp, Ep, V, Vp, tn = (prep['H'], prep['Hp'], prep['Ep'], prep['V'],
                            prep['Vp'], prep['tn'])
    dtype = prep['dtype']
    if approx_recip is None:
        approx_recip = (dtype == jnp.bfloat16)

    B = inputs.shape[0]
    tb, Bp = _pick_tile_b(B, dtype, tile_b)
    S = enc_prepared.shape[1]
    nV = Vp // tn

    # Per-step glue (outside kernel): embedding gather + tiny emb/h0 padding.
    emb = jnp.pad(prep['embedding'][inputs], ((0, Bp - B), (0, 0)))        # (Bp, Ep)
    h0 = jnp.pad(last_hidden[0], ((0, Bp - B), (0, Hp - H))).astype(dtype)  # (Bp, Hp)
    enc = enc_prepared
    if enc.shape[0] < Bp:   # compat path if the caller did not pre-pad batch
        enc = jnp.pad(enc, ((0, Bp - enc.shape[0]), (0, 0), (0, 0)))

    args = (emb, h0, enc,
            prep['wa_h'], prep['wa_e'], prep['wa_vb'],
            prep['w_gi'], prep['w_h'], prep['b_g'],
            prep['w_out'], prep['b_o'])

    in_specs = [
        # batch-tiled activations (change with i, constant along j)
        _spec((tb, Ep), lambda i, j: (i, 0)),
        _spec((tb, Hp), lambda i, j: (i, 0)),
        _spec((tb, S, Hp), lambda i, j: (i, 0, 0)),
        # invariant weights: resident, single-buffered (fetched once)
        _spec(prep['wa_h'].shape, lambda i, j: (0, 0), buffers=1),
        _spec(prep['wa_e'].shape, lambda i, j: (0, 0), buffers=1),
        _spec(prep['wa_vb'].shape, lambda i, j: (0, 0), buffers=1),
        _spec(prep['w_gi'].shape, lambda i, j: (0, 0), buffers=1),
        _spec(prep['w_h'].shape, lambda i, j: (0, 0), buffers=1),
        _spec(prep['b_g'].shape, lambda i, j: (0, 0), buffers=1),
        # streamed vocab tiles of the output projection (pipelined)
        _spec((2 * Hp, tn), lambda i, j: (0, j), buffers=proj_buffers),
        _spec((1, tn), lambda i, j: (0, j), buffers=proj_buffers),
    ]
    out_specs = (
        pl.BlockSpec((tb, nV, tn), lambda i, j: (i, 0, 0)),  # resident across j
        pl.BlockSpec((tb, Hp), lambda i, j: (i, 0)),
    )
    out_shape = (jax.ShapeDtypeStruct((Bp, nV, tn), logp_dtype),
                 jax.ShapeDtypeStruct((Bp, Hp), jnp.float32))
    scratch_shapes = [pltpu.VMEM((tb, 2 * Hp), dtype),     # [h_new | context]
                      pltpu.VMEM((tb, 1), jnp.float32),    # running max
                      pltpu.VMEM((tb, 1), jnp.float32)]    # running sum-exp

    # VMEM budget: every block counted with its actual buffer depth + headroom
    def nbytes(shape, dt):
        return math.prod(shape) * jnp.dtype(dt).itemsize

    est = 2 * (nbytes((tb, Ep), dtype) + nbytes((tb, Hp), dtype)
               + nbytes((tb, S, Hp), dtype))
    est += sum(nbytes(a.shape, a.dtype) for a in args[3:9])
    est += proj_buffers * (nbytes((2 * Hp, tn), dtype) + nbytes((1, tn), jnp.float32))
    est += 2 * (nbytes((tb, nV, tn), logp_dtype) + nbytes((tb, Hp), jnp.float32))
    est += nbytes((tb, 2 * Hp), dtype) + 2 * nbytes((tb, 128), jnp.float32)
    # in-kernel f32 intermediates (energies / part_e / gates / logits)
    est += 2 * nbytes((tb, S, Hp), jnp.float32) + 2 * nbytes((tb, 3 * Hp), jnp.float32)
    est += 2 * nbytes((tb, tn), jnp.float32)
    cap = _vmem_capacity_bytes()
    vmem_limit = int(min(max(int(est * 1.25) + (2 << 20), 32 << 20),
                         int(0.9 * cap)))

    kernel = functools.partial(decoder_kernel, approx_recip=approx_recip)
    logp_p, h_new_p = pl.pallas_call(
        kernel,
        out_shape=out_shape,
        grid=(Bp // tb, nV),
        in_specs=in_specs,
        out_specs=out_specs,
        scratch_shapes=scratch_shapes,
        compiler_params=pltpu.CompilerParams(
            dimension_semantics=("parallel", "arbitrary"),
            vmem_limit_bytes=vmem_limit),
    )(*args)

    # (Bp, nV, tn) -> (Bp, Vp) is a contiguous minor-dim merge (free reshape).
    logp = logp_p.reshape(Bp, nV * tn)[:B, :V].astype(jnp.float32)
    return logp, h_new_p[None, :B, :H]


def decoder_forward(inputs, last_hidden, keycode_enc_outputs, params,
                    dtype=jnp.float32):
    """Convenience wrapper matching the torch signature (prep done inline)."""
    prep = prepare_params(params, dtype)
    enc = prepare_encoder_outputs(keycode_enc_outputs, prep)
    return decoder_step(inputs, last_hidden, enc, prep)


# ----------------------- plain-JAX reference (torch semantics) ------------- #
def decoder_reference(inputs, last_hidden, enc_outputs, params):
    emb = params['embedding'][inputs]
    h0 = last_hidden[0]
    S, B, H = enc_outputs.shape
    enc_b = jnp.transpose(enc_outputs, (1, 0, 2))
    lh = jnp.broadcast_to(h0[:, None, :], (B, S, H))
    cat = jnp.concatenate([lh, enc_b], axis=2)
    energies = jax.nn.relu(cat @ params['wa_w'].T + params['wa_b'])
    scores = jnp.einsum('bsh,h->bs', energies, params['va'])
    attn = jax.nn.softmax(scores, axis=1)
    context = jnp.einsum('bs,bsh->bh', attn, enc_b)
    x = jnp.concatenate([emb, context], axis=1)
    gi = x @ params['w_ih'].T + params['b_ih']
    gh = h0 @ params['w_hh'].T + params['b_hh']
    r = jax.nn.sigmoid(gi[:, :H] + gh[:, :H])
    z = jax.nn.sigmoid(gi[:, H:2 * H] + gh[:, H:2 * H])
    n = jnp.tanh(gi[:, 2 * H:] + r * gh[:, 2 * H:])
    h_new = (1.0 - z) * n + z * h0
    out_cat = jnp.concatenate([h_new, context], axis=1)
    logits = out_cat @ params['w_out'].T + params['b_out']
    return jax.nn.log_softmax(logits, axis=1), h_new[None]


# ----------------------------- params ------------------------------------- #
def init_params(key, vocab, emb_dim, hdn):
    ks = jax.random.split(key, 8)
    init_std = 1e-4
    gru_b = jnp.zeros((3 * hdn,), jnp.float32)
    gru_b = gru_b.at[(3 * hdn) // 4:(3 * hdn) // 2].set(1.0)
    return {
        'embedding': jax.random.normal(ks[0], (vocab, emb_dim), jnp.float32) * init_std,
        'wa_w': jax.random.normal(ks[1], (hdn, 2 * hdn), jnp.float32)
                / jnp.sqrt(2.0 * hdn),
        'wa_b': jax.random.normal(ks[2], (hdn,), jnp.float32) / jnp.sqrt(2.0 * hdn),
        'va': jax.random.normal(ks[3], (hdn,), jnp.float32) / jnp.sqrt(1.0 * hdn),
        'w_ih': jax.random.uniform(ks[4], (3 * hdn, emb_dim + hdn), jnp.float32,
                                   -0.02, 0.02),
        'w_hh': jax.random.uniform(ks[5], (3 * hdn, hdn), jnp.float32, -0.02, 0.02),
        'b_ih': gru_b,
        'b_hh': gru_b,
        'w_out': jax.random.normal(ks[6], (vocab, 2 * hdn), jnp.float32) * init_std,
        'b_out': jax.random.normal(ks[7], (vocab,), jnp.float32) * init_std,
    }


if __name__ == "__main__":
    # batch, seq, decoder_hdn_size, embedding_dim, vocab
    B, S, H, E, V = 16, 8, 32, 32, 50
    key = jax.random.PRNGKey(0)
    kp, k1, k2, k3 = jax.random.split(key, 4)

    params = init_params(kp, V, E, H)
    inputs = jax.random.randint(k1, (B,), 0, V, dtype=jnp.int32)
    last_hidden = jax.random.normal(k2, (1, B, H), jnp.float32)
    keycode_enc_outputs = jax.random.normal(k3, (S, B, H), jnp.float32)

    ref_logp, ref_h = decoder_reference(inputs, last_hidden, keycode_enc_outputs, params)

    # ---- f32 path: tight correctness check ----
    prep32 = prepare_params(params, jnp.float32)
    enc32 = prepare_encoder_outputs(keycode_enc_outputs, prep32)
    logp, h_new = decoder_step(inputs, last_hidden, enc32, prep32)
    jax.block_until_ready((logp, h_new))
    assert logp.shape == (B, V) and h_new.shape == (1, B, H)
    assert jnp.allclose(logp, ref_logp, atol=1e-5, rtol=1e-5)
    assert jnp.allclose(h_new, ref_h, atol=1e-5, rtol=1e-5)

    # ---- bf16 fast path (bf16 MXU operands + approx EUP reciprocal) ----
    prep16 = prepare_params(params, jnp.bfloat16)
    enc16 = prepare_encoder_outputs(keycode_enc_outputs, prep16)
    logp16, h16 = decoder_step(inputs, last_hidden, enc16, prep16)
    jax.block_until_ready((logp16, h16))
    assert jnp.allclose(logp16, ref_logp, atol=5e-2, rtol=5e-2)
    assert jnp.allclose(h16, ref_h, atol=5e-2, rtol=5e-2)

    print("KERNEL_OK")
</pallas_src>

<mosaic_0001>
module attributes {stable_mosaic.version = 11 : i64} {
  func.func @decoder_kernel(%arg0: i32, %arg1: i32, %arg2: memref<16x128xf32, #tpu.memory_space<vmem>>, %arg3: memref<16x128xf32, #tpu.memory_space<vmem>>, %arg4: memref<16x8x128xf32, #tpu.memory_space<vmem>>, %arg5: memref<128x128xf32, #tpu.memory_space<vmem>>, %arg6: memref<128x128xf32, #tpu.memory_space<vmem>>, %arg7: memref<2x128xf32, #tpu.memory_space<vmem>>, %arg8: memref<256x384xf32, #tpu.memory_space<vmem>>, %arg9: memref<128x384xf32, #tpu.memory_space<vmem>>, %arg10: memref<2x384xf32, #tpu.memory_space<vmem>>, %arg11: memref<256x128xf32, #tpu.memory_space<vmem>>, %arg12: memref<1x128xf32, #tpu.memory_space<vmem>>, %arg13: memref<16x1x128xf32, #tpu.memory_space<vmem>>, %arg14: memref<16x128xf32, #tpu.memory_space<vmem>>, %arg15: memref<16x256xf32, #tpu.memory_space<vmem>>, %arg16: memref<16x1xf32, #tpu.memory_space<vmem>>, %arg17: memref<16x1xf32, #tpu.memory_space<vmem>>) attributes {dimension_semantics = [#tpu.dimension_semantics<parallel>, #tpu.dimension_semantics<arbitrary>], iteration_bounds = array<i64: 1, 1>, scalar_prefetch = 0 : i64, scratch_operands = 3 : i64, tpu.core_type = #tpu.core_type<tc>, window_params = [{transform_indices = @transform_0, window_bounds = array<i64: 16, 128>}, {transform_indices = @transform_1, window_bounds = array<i64: 16, 128>}, {transform_indices = @transform_2, window_bounds = array<i64: 16, 8, 128>}, {pipeline_mode = #tpu.pipeline_mode<synchronous>, transform_indices = @transform_3, window_bounds = array<i64: 128, 128>}, {pipeline_mode = #tpu.pipeline_mode<synchronous>, transform_indices = @transform_4, window_bounds = array<i64: 128, 128>}, {pipeline_mode = #tpu.pipeline_mode<synchronous>, transform_indices = @transform_5, window_bounds = array<i64: 2, 128>}, {pipeline_mode = #tpu.pipeline_mode<synchronous>, transform_indices = @transform_6, window_bounds = array<i64: 256, 384>}, {pipeline_mode = #tpu.pipeline_mode<synchronous>, transform_indices = @transform_7, window_bounds = array<i64: 128, 384>}, {pipeline_mode = #tpu.pipeline_mode<synchronous>, transform_indices = @transform_8, window_bounds = array<i64: 2, 384>}, {pipeline_mode = #tpu.pipeline_mode<double_buffered>, transform_indices = @transform_9, window_bounds = array<i64: 256, 128>}, {pipeline_mode = #tpu.pipeline_mode<double_buffered>, transform_indices = @transform_10, window_bounds = array<i64: 1, 128>}, {transform_indices = @transform_11, window_bounds = array<i64: 16, 1, 128>}, {transform_indices = @transform_12, window_bounds = array<i64: 16, 128>}]} {
    %c0_i32 = arith.constant 0 : i32
    %0 = arith.cmpi eq, %arg1, %c0_i32 : i32
    %1 = arith.extui %0 : i1 to i32
    %c0_i32_0 = arith.constant 0 : i32
    %2 = arith.cmpi ne, %1, %c0_i32_0 : i32
    scf.if %2 {
      %c0_20 = arith.constant 0 : index
      %c0_21 = arith.constant 0 : index
      %31 = vector.load %arg2[%c0_20, %c0_21] : memref<16x128xf32, #tpu.memory_space<vmem>>, vector<16x128xf32>
      %c0_22 = arith.constant 0 : index
      %c0_23 = arith.constant 0 : index
      %32 = vector.load %arg3[%c0_22, %c0_23] : memref<16x128xf32, #tpu.memory_space<vmem>>, vector<16x128xf32>
      %c0_24 = arith.constant 0 : index
      %c0_25 = arith.constant 0 : index
      %c0_26 = arith.constant 0 : index
      %33 = vector.load %arg4[%c0_24, %c0_25, %c0_26] : memref<16x8x128xf32, #tpu.memory_space<vmem>>, vector<16x8x128xf32>
      %c0_27 = arith.constant 0 : index
      %c0_28 = arith.constant 0 : index
      %34 = vector.load %arg7[%c0_27, %c0_28] : memref<2x128xf32, #tpu.memory_space<vmem>>, vector<2x128xf32>
      %35 = vector.extract_strided_slice %34 {offsets = [0, 0], sizes = [1, 128], strides = [1, 1]} : vector<2x128xf32> to vector<1x128xf32>
      %36 = vector.extract_strided_slice %34 {offsets = [1, 0], sizes = [1, 128], strides = [1, 1]} : vector<2x128xf32> to vector<1x128xf32>
      %c0_29 = arith.constant 0 : index
      %c0_30 = arith.constant 0 : index
      %37 = vector.load %arg5[%c0_29, %c0_30] : memref<128x128xf32, #tpu.memory_space<vmem>>, vector<128x128xf32>
      %cst_31 = arith.constant dense<0.000000e+00> : vector<16x128xf32>
      %38 = tpu.matmul %32, %37, %cst_31 {dimension_numbers = #tpu.dot_dimension_numbers<[1], [0], [0], [1], [0, 0, 1, 1], [], []>} : vector<16x128xf32>, vector<128x128xf32>, vector<16x128xf32> -> vector<16x128xf32>
      %39 = vector.shape_cast %33 : vector<16x8x128xf32> to vector<128x128xf32>
      %c0_32 = arith.constant 0 : index
      %c0_33 = arith.constant 0 : index
      %40 = vector.load %arg6[%c0_32, %c0_33] : memref<128x128xf32, #tpu.memory_space<vmem>>, vector<128x128xf32>
      %cst_34 = arith.constant dense<0.000000e+00> : vector<128x128xf32>
      %41 = tpu.matmul %39, %40, %cst_34 {dimension_numbers = #tpu.dot_dimension_numbers<[1], [0], [0], [1], [0, 0, 1, 1], [], []>} : vector<128x128xf32>, vector<128x128xf32>, vector<128x128xf32> -> vector<128x128xf32>
      %42 = vector.shape_cast %41 : vector<128x128xf32> to vector<16x8x128xf32>
      %43 = vector.shape_cast %38 : vector<16x128xf32> to vector<16x1x128xf32>
      %44 = vector.broadcast %43 : vector<16x1x128xf32> to vector<16x8x128xf32>
      %45 = arith.addf %44, %42 : vector<16x8x128xf32>
      %46 = vector.shape_cast %35 : vector<1x128xf32> to vector<1x1x128xf32>
      %47 = vector.broadcast %46 : vector<1x1x128xf32> to vector<16x8x128xf32>
      %48 = arith.addf %45, %47 : vector<16x8x128xf32>
      %cst_35 = arith.constant 0.000000e+00 : f32
      %49 = vector.broadcast %cst_35 : f32 to vector<16x8x128xf32>
      %50 = arith.maximumf %48, %49 : vector<16x8x128xf32>
      %51 = vector.shape_cast %36 : vector<1x128xf32> to vector<1x1x128xf32>
      %52 = vector.broadcast %51 : vector<1x1x128xf32> to vector<16x8x128xf32>
      %53 = arith.mulf %50, %52 : vector<16x8x128xf32>
      %cst_36 = arith.constant dense<0.000000e+00> : vector<16x8xf32>
      %54 = vector.multi_reduction <add>, %53, %cst_36 [2] : vector<16x8x128xf32> to vector<16x8xf32>
      %cst_37 = arith.constant dense<0xFF800000> : vector<16xf32>
      %55 = vector.multi_reduction <maximumf>, %54, %cst_37 [1] : vector<16x8xf32> to vector<16xf32>
      %56 = vector.shape_cast %55 : vector<16xf32> to vector<16x1xf32>
      %57 = vector.broadcast %56 : vector<16x1xf32> to vector<16x8xf32>
      %58 = arith.subf %54, %57 : vector<16x8xf32>
      %59 = math.exp %58 : vector<16x8xf32>
      %cst_38 = arith.constant dense<0.000000e+00> : vector<16xf32>
      %60 = vector.multi_reduction <add>, %59, %cst_38 [1] : vector<16x8xf32> to vector<16xf32>
      %61 = vector.shape_cast %60 : vector<16xf32> to vector<16x1xf32>
      %62 = vector.broadcast %61 : vector<16x1xf32> to vector<16x8xf32>
      %63 = arith.divf %59, %62 : vector<16x8xf32>
      %64 = vector.shape_cast %63 : vector<16x8xf32> to vector<16x8x1xf32>
      %65 = vector.broadcast %64 : vector<16x8x1xf32> to vector<16x8x128xf32>
      %66 = arith.mulf %65, %33 : vector<16x8x128xf32>
      %cst_39 = arith.constant dense<0.000000e+00> : vector<16x128xf32>
      %67 = vector.multi_reduction <add>, %66, %cst_39 [1] : vector<16x8x128xf32> to vector<16x128xf32>
      %68 = tpu.concatenate %31, %67 in 1 : vector<16x128xf32>, vector<16x128xf32> -> vector<16x256xf32>
      %c0_40 = arith.constant 0 : index
      %c0_41 = arith.constant 0 : index
      %69 = vector.load %arg10[%c0_40, %c0_41] : memref<2x384xf32, #tpu.memory_space<vmem>>, vector<2x384xf32>
      %c0_42 = arith.constant 0 : index
      %c0_43 = arith.constant 0 : index
      %70 = vector.load %arg8[%c0_42, %c0_43] : memref<256x384xf32, #tpu.memory_space<vmem>>, vector<256x384xf32>
      %cst_44 = arith.constant dense<0.000000e+00> : vector<16x384xf32>
      %71 = tpu.matmul %68, %70, %cst_44 {dimension_numbers = #tpu.dot_dimension_numbers<[1], [0], [0], [1], [0, 0, 1, 1], [], []>} : vector<16x256xf32>, vector<256x384xf32>, vector<16x384xf32> -> vector<16x384xf32>
      %72 = vector.extract_strided_slice %69 {offsets = [0, 0], sizes = [1, 384], strides = [1, 1]} : vector<2x384xf32> to vector<1x384xf32>
      %73 = vector.broadcast %72 : vector<1x384xf32> to vector<16x384xf32>
      %74 = arith.addf %71, %73 : vector<16x384xf32>
      %c0_45 = arith.constant 0 : index
      %c0_46 = arith.constant 0 : index
      %75 = vector.load %arg9[%c0_45, %c0_46] : memref<128x384xf32, #tpu.memory_space<vmem>>, vector<128x384xf32>
      %cst_47 = arith.constant dense<0.000000e+00> : vector<16x384xf32>
      %76 = tpu.matmul %32, %75, %cst_47 {dimension_numbers = #tpu.dot_dimension_numbers<[1], [0], [0], [1], [0, 0, 1, 1], [], []>} : vector<16x128xf32>, vector<128x384xf32>, vector<16x384xf32> -> vector<16x384xf32>
      %77 = vector.extract_strided_slice %69 {offsets = [1, 0], sizes = [1, 384], strides = [1, 1]} : vector<2x384xf32> to vector<1x384xf32>
      %78 = vector.broadcast %77 : vector<1x384xf32> to vector<16x384xf32>
      %79 = arith.addf %76, %78 : vector<16x384xf32>
      %80 = vector.extract_strided_slice %74 {offsets = [0, 0], sizes = [16, 128], strides = [1, 1]} : vector<16x384xf32> to vector<16x128xf32>
      %81 = vector.extract_strided_slice %79 {offsets = [0, 0], sizes = [16, 128], strides = [1, 1]} : vector<16x384xf32> to vector<16x128xf32>
      %82 = arith.addf %80, %81 : vector<16x128xf32>
      %83 = arith.negf %82 : vector<16x128xf32>
      %84 = math.exp %83 : vector<16x128xf32>
      %cst_48 = arith.constant 1.000000e+00 : f32
      %85 = vector.broadcast %cst_48 : f32 to vector<16x128xf32>
      %86 = arith.addf %85, %84 : vector<16x128xf32>
      %87 = arith.divf %85, %86 : vector<16x128xf32>
      %88 = vector.extract_strided_slice %74 {offsets = [0, 128], sizes = [16, 128], strides = [1, 1]} : vector<16x384xf32> to vector<16x128xf32>
      %89 = vector.extract_strided_slice %79 {offsets = [0, 128], sizes = [16, 128], strides = [1, 1]} : vector<16x384xf32> to vector<16x128xf32>
      %90 = arith.addf %88, %89 : vector<16x128xf32>
      %91 = arith.negf %90 : vector<16x128xf32>
      %92 = math.exp %91 : vector<16x128xf32>
      %cst_49 = arith.constant 1.000000e+00 : f32
      %93 = vector.broadcast %cst_49 : f32 to vector<16x128xf32>
      %94 = arith.addf %93, %92 : vector<16x128xf32>
      %95 = arith.divf %93, %94 : vector<16x128xf32>
      %96 = vector.extract_strided_slice %74 {offsets = [0, 256], sizes = [16, 128], strides = [1, 1]} : vector<16x384xf32> to vector<16x128xf32>
      %97 = vector.extract_strided_slice %79 {offsets = [0, 256], sizes = [16, 128], strides = [1, 1]} : vector<16x384xf32> to vector<16x128xf32>
      %98 = arith.mulf %87, %97 : vector<16x128xf32>
      %99 = arith.addf %96, %98 : vector<16x128xf32>
      %100 = math.tanh %99 : vector<16x128xf32>
      %cst_50 = arith.constant 1.000000e+00 : f32
      %101 = vector.broadcast %cst_50 : f32 to vector<16x128xf32>
      %102 = arith.subf %101, %95 : vector<16x128xf32>
      %103 = arith.mulf %102, %100 : vector<16x128xf32>
      %104 = arith.mulf %95, %32 : vector<16x128xf32>
      %105 = arith.addf %103, %104 : vector<16x128xf32>
      %c0_51 = arith.constant 0 : index
      %c0_52 = arith.constant 0 : index
      %106 = vector.load %arg14[%c0_51, %c0_52] : memref<16x128xf32, #tpu.memory_space<vmem>>, vector<16x128xf32>
      tpu.vector_store %arg14[%c0_51, %c0_52], %105 {strides = array<i32>} : memref<16x128xf32, #tpu.memory_space<vmem>>, vector<16x128xf32>,
      %107 = tpu.concatenate %105, %67 in 1 : vector<16x128xf32>, vector<16x128xf32> -> vector<16x256xf32>
      %c0_53 = arith.constant 0 : index
      %c0_54 = arith.constant 0 : index
      %108 = vector.load %arg15[%c0_53, %c0_54] : memref<16x256xf32, #tpu.memory_space<vmem>>, vector<16x256xf32>
      tpu.vector_store %arg15[%c0_53, %c0_54], %107 {strides = array<i32>} : memref<16x256xf32, #tpu.memory_space<vmem>>, vector<16x256xf32>,
      %cst_55 = arith.constant -1.000000e+30 : f32
      %109 = vector.broadcast %cst_55 : f32 to vector<16x1xf32>
      %c0_56 = arith.constant 0 : index
      %c0_57 = arith.constant 0 : index
      %110 = vector.load %arg16[%c0_56, %c0_57] : memref<16x1xf32, #tpu.memory_space<vmem>>, vector<16x1xf32>
      tpu.vector_store %arg16[%c0_56, %c0_57], %109 {strides = array<i32>} : memref<16x1xf32, #tpu.memory_space<vmem>>, vector<16x1xf32>,
      %cst_58 = arith.constant 0.000000e+00 : f32
      %111 = vector.broadcast %cst_58 : f32 to vector<16x1xf32>
      %c0_59 = arith.constant 0 : index
      %c0_60 = arith.constant 0 : index
      %112 = vector.load %arg17[%c0_59, %c0_60] : memref<16x1xf32, #tpu.memory_space<vmem>>, vector<16x1xf32>
      tpu.vector_store %arg17[%c0_59, %c0_60], %111 {strides = array<i32>} : memref<16x1xf32, #tpu.memory_space<vmem>>, vector<16x1xf32>,
    } else {
    }
    %c0 = arith.constant 0 : index
    %c0_1 = arith.constant 0 : index
    %3 = vector.load %arg15[%c0, %c0_1] : memref<16x256xf32, #tpu.memory_space<vmem>>, vector<16x256xf32>
    %c0_2 = arith.constant 0 : index
    %c0_3 = arith.constant 0 : index
    %4 = vector.load %arg11[%c0_2, %c0_3] : memref<256x128xf32, #tpu.memory_space<vmem>>, vector<256x128xf32>
    %cst = arith.constant dense<0.000000e+00> : vector<16x128xf32>
    %5 = tpu.matmul %3, %4, %cst {dimension_numbers = #tpu.dot_dimension_numbers<[1], [0], [0], [1], [0, 0, 1, 1], [], []>} : vector<16x256xf32>, vector<256x128xf32>, vector<16x128xf32> -> vector<16x128xf32>
    %c0_4 = arith.constant 0 : index
    %c0_5 = arith.constant 0 : index
    %6 = vector.load %arg12[%c0_4, %c0_5] : memref<1x128xf32, #tpu.memory_space<vmem>>, vector<1x128xf32>
    %7 = vector.broadcast %6 : vector<1x128xf32> to vector<16x128xf32>
    %8 = arith.addf %5, %7 : vector<16x128xf32>
    %c0_6 = arith.constant 0 : index
    %c0_7 = arith.constant 0 : index
    %9 = vector.load %arg16[%c0_6, %c0_7] : memref<16x1xf32, #tpu.memory_space<vmem>>, vector<16x1xf32>
    %cst_8 = arith.constant dense<0xFF800000> : vector<16xf32>
    %10 = vector.multi_reduction <maximumf>, %8, %cst_8 [1] : vector<16x128xf32> to vector<16xf32>
    %11 = vector.shape_cast %10 : vector<16xf32> to vector<16x1xf32>
    %12 = arith.maximumf %9, %11 : vector<16x1xf32>
    %c0_9 = arith.constant 0 : index
    %c0_10 = arith.constant 0 : index
    %13 = vector.load %arg17[%c0_9, %c0_10] : memref<16x1xf32, #tpu.memory_space<vmem>>, vector<16x1xf32>
    %14 = arith.subf %9, %12 : vector<16x1xf32>
    %15 = math.exp %14 : vector<16x1xf32>
    %16 = arith.mulf %13, %15 : vector<16x1xf32>
    %17 = vector.broadcast %12 : vector<16x1xf32> to vector<16x128xf32>
    %18 = arith.subf %8, %17 : vector<16x128xf32>
    %19 = math.exp %18 : vector<16x128xf32>
    %cst_11 = arith.constant dense<0.000000e+00> : vector<16xf32>
    %20 = vector.multi_reduction <add>, %19, %cst_11 [1] : vector<16x128xf32> to vector<16xf32>
    %21 = vector.shape_cast %20 : vector<16xf32> to vector<16x1xf32>
    %22 = arith.addf %16, %21 : vector<16x1xf32>
    %c0_12 = arith.constant 0 : index
    %c0_13 = arith.constant 0 : index
    %23 = vector.load %arg17[%c0_12, %c0_13] : memref<16x1xf32, #tpu.memory_space<vmem>>, vector<16x1xf32>
    tpu.vector_store %arg17[%c0_12, %c0_13], %22 {strides = array<i32>} : memref<16x1xf32, #tpu.memory_space<vmem>>, vector<16x1xf32>,
    %c0_14 = arith.constant 0 : index
    %c0_15 = arith.constant 0 : index
    %24 = vector.load %arg16[%c0_14, %c0_15] : memref<16x1xf32, #tpu.memory_space<vmem>>, vector<16x1xf32>
    tpu.vector_store %arg16[%c0_14, %c0_15], %12 {strides = array<i32>} : memref<16x1xf32, #tpu.memory_space<vmem>>, vector<16x1xf32>,
    %25 = vector.shape_cast %8 : vector<16x128xf32> to vector<16x1x128xf32>
    %c0_16 = arith.constant 0 : index
    %26 = arith.index_cast %arg1 : i32 to index
    %c0_17 = arith.constant 0 : index
    %27 = vector.load %arg13[%c0_16, %26, %c0_17] : memref<16x1x128xf32, #tpu.memory_space<vmem>>, vector<16x1x128xf32>
    tpu.vector_store %arg13[%c0_16, %26, %c0_17], %25 {strides = array<i32>} : memref<16x1x128xf32, #tpu.memory_space<vmem>>, vector<16x1x128xf32>,
    %c0_i32_18 = arith.constant 0 : i32
    %28 = arith.cmpi eq, %arg1, %c0_i32_18 : i32
    %29 = arith.extui %28 : i1 to i32
    %c0_i32_19 = arith.constant 0 : i32
    %30 = arith.cmpi ne, %29, %c0_i32_19 : i32
    scf.if %30 {
      %c0_20 = arith.constant 0 : index
      %c0_21 = arith.constant 0 : index
      %31 = vector.load %arg16[%c0_20, %c0_21] : memref<16x1xf32, #tpu.memory_space<vmem>>, vector<16x1xf32>
      %c0_22 = arith.constant 0 : index
      %c0_23 = arith.constant 0 : index
      %32 = vector.load %arg17[%c0_22, %c0_23] : memref<16x1xf32, #tpu.memory_space<vmem>>, vector<16x1xf32>
      %33 = math.log %32 : vector<16x1xf32>
      %34 = arith.addf %31, %33 : vector<16x1xf32>
      %35 = vector.shape_cast %34 : vector<16x1xf32> to vector<16x1x1xf32>
      %c0_24 = arith.constant 0 : index
      %c0_25 = arith.constant 0 : index
      %c0_26 = arith.constant 0 : index
      %36 = vector.load %arg13[%c0_24, %c0_25, %c0_26] : memref<16x1x128xf32, #tpu.memory_space<vmem>>, vector<16x1x128xf32>
      %37 = vector.broadcast %35 : vector<16x1x1xf32> to vector<16x1x128xf32>
      %38 = arith.subf %36, %37 : vector<16x1x128xf32>
      %c0_27 = arith.constant 0 : index
      %c0_28 = arith.constant 0 : index
      %c0_29 = arith.constant 0 : index
      %39 = vector.load %arg13[%c0_27, %c0_28, %c0_29] : memref<16x1x128xf32, #tpu.memory_space<vmem>>, vector<16x1x128xf32>
      tpu.vector_store %arg13[%c0_27, %c0_28, %c0_29], %38 {strides = array<i32>} : memref<16x1x128xf32, #tpu.memory_space<vmem>>, vector<16x1x128xf32>,
    } else {
    }
    return
  }
  func.func @transform_0(%arg0: i32, %arg1: i32) -> (i32, i32) {
    %c0_i32 = arith.constant 0 : i32
    %c0_i32_0 = arith.constant 0 : i32
    return %arg0, %c0_i32 : i32, i32
  }
  func.func @transform_1(%arg0: i32, %arg1: i32) -> (i32, i32) {
    %c0_i32 = arith.constant 0 : i32
    %c0_i32_0 = arith.constant 0 : i32
    return %arg0, %c0_i32 : i32, i32
  }
  func.func @transform_2(%arg0: i32, %arg1: i32) -> (i32, i32, i32) {
    %c0_i32 = arith.constant 0 : i32
    %c0_i32_0 = arith.constant 0 : i32
    %c0_i32_1 = arith.constant 0 : i32
    return %arg0, %c0_i32, %c0_i32_0 : i32, i32, i32
  }
  func.func @transform_3(%arg0: i32, %arg1: i32) -> (i32, i32) {
    %c0_i32 = arith.constant 0 : i32
    %c0_i32_0 = arith.constant 0 : i32
    %c0_i32_1 = arith.constant 0 : i32
    return %c0_i32, %c0_i32_0 : i32, i32
  }
  func.func @transform_4(%arg0: i32, %arg1: i32) -> (i32, i32) {
    %c0_i32 = arith.constant 0 : i32
    %c0_i32_0 = arith.constant 0 : i32
    %c0_i32_1 = arith.constant 0 : i32
    return %c0_i32, %c0_i32_0 : i32, i32
  }
  func.func @transform_5(%arg0: i32, %arg1: i32) -> (i32, i32) {
    %c0_i32 = arith.constant 0 : i32
    %c0_i32_0 = arith.constant 0 : i32
    %c0_i32_1 = arith.constant 0 : i32
    return %c0_i32, %c0_i32_0 : i32, i32
  }
  func.func @transform_6(%arg0: i32, %arg1: i32) -> (i32, i32) {
    %c0_i32 = arith.constant 0 : i32
    %c0_i32_0 = arith.constant 0 : i32
    %c0_i32_1 = arith.constant 0 : i32
    return %c0_i32, %c0_i32_0 : i32, i32
  }
  func.func @transform_7(%arg0: i32, %arg1: i32) -> (i32, i32) {
    %c0_i32 = arith.constant 0 : i32
    %c0_i32_0 = arith.constant 0 : i32
    %c0_i32_1 = arith.constant 0 : i32
    return %c0_i32, %c0_i32_0 : i32, i32
  }
  func.func @transform_8(%arg0: i32, %arg1: i32) -> (i32, i32) {
    %c0_i32 = arith.constant 0 : i32
    %c0_i32_0 = arith.constant 0 : i32
    %c0_i32_1 = arith.constant 0 : i32
    return %c0_i32, %c0_i32_0 : i32, i32
  }
  func.func @transform_9(%arg0: i32, %arg1: i32) -> (i32, i32) {
    %c0_i32 = arith.constant 0 : i32
    %c0_i32_0 = arith.constant 0 : i32
    return %c0_i32, %arg1 : i32, i32
  }
  func.func @transform_10(%arg0: i32, %arg1: i32) -> (i32, i32) {
    %c0_i32 = arith.constant 0 : i32
    %c0_i32_0 = arith.constant 0 : i32
    return %c0_i32, %arg1 : i32, i32
  }
  func.func @transform_11(%arg0: i32, %arg1: i32) -> (i32, i32, i32) {
    %c0_i32 = arith.constant 0 : i32
    %c0_i32_0 = arith.constant 0 : i32
    %c0_i32_1 = arith.constant 0 : i32
    return %arg0, %c0_i32, %c0_i32_0 : i32, i32, i32
  }
  func.func @transform_12(%arg0: i32, %arg1: i32) -> (i32, i32) {
    %c0_i32 = arith.constant 0 : i32
    %c0_i32_0 = arith.constant 0 : i32
    return %arg0, %c0_i32 : i32, i32
  }
}

</mosaic_0001>

<llo_original>
// kernel: tpu_custom_call.1
$region0: #{tpu_custom_call.1}
  #allocation0 [shape = 'u32[]', space=smem, size = 0x4, offset = 0x4, fixed_abs, tag = 'smem constant byte address 0x4 - core index']
  #allocation1 [shape = 'u32[72,128]{1,0:T(1,128)}', space=vmem, size = 0x9000, scoped, tag = 'internal scratch']
  #allocation2 [shape = 'f32[16,256]{1,0:T(8,128)}', space=vmem, size = 0x4000, scoped, tag = 'scratch operand']
  #allocation3 [shape = 'f32[16,1]{1,0:T(8,128)}', space=vmem, size = 0x2000, scoped, tag = 'scratch operand']
  #allocation4 [shape = 'f32[16,1]{1,0:T(8,128)}', space=vmem, size = 0x2000, scoped, tag = 'scratch operand']
  %s0 = inlined_call_operand.hbm [shape: f32[16,128], index: 0, kind: input, shape index: {}]
  %s1 = inlined_call_operand.hbm [shape: f32[16,128], index: 1, kind: input, shape index: {}]
  %s2 = inlined_call_operand.hbm [shape: f32[16,8,128], index: 2, kind: input, shape index: {}]
  %s3 = inlined_call_operand.hbm [shape: f32[128,128], index: 3, kind: input, shape index: {}]
  %s4 = inlined_call_operand.hbm [shape: f32[128,128], index: 4, kind: input, shape index: {}]
  %s5 = inlined_call_operand.hbm [shape: f32[2,128], index: 5, kind: input, shape index: {}]
  %s6 = inlined_call_operand.hbm [shape: f32[256,384], index: 6, kind: input, shape index: {}]
  %s7 = inlined_call_operand.hbm [shape: f32[128,384], index: 7, kind: input, shape index: {}]
  %s8 = inlined_call_operand.vmem [shape: f32[2,384], index: 8, kind: input, shape index: {}]
  %s9 = inlined_call_operand.hbm [shape: f32[256,128], index: 9, kind: input, shape index: {}]
  %s10 = inlined_call_operand.vmem [shape: f32[1,128], index: 10, kind: input, shape index: {}]
  %s11 = inlined_call_operand.hbm [shape: f32[16,1,128], index: 11, kind: output, shape index: {0}]
  %s12 = inlined_call_operand.hbm [shape: f32[16,128], index: 12, kind: output, shape index: {1}]
  %13 = xla_tuple %s11, %s12
  %s14 = sld [smem:[#allocation0]]
  $region106: #{tpu_custom_call.1} parent=0
    _
  %s16 = ssub.s32 1, %s14
  %s17 = scalar_select 0, %s16, %s14
  $region1: #{tpu_custom_call.1} parent=0
    #allocation5 [shape = 'u8[8192]{0}', space=vmem, size = 0x2000, scoped, tag = 'input window, operand 0, single buffered']
    #allocation6 [shape = 's32[1]{0}', space=sflag, size = 0x4, scoped, tag = 'scoped memory for tpu_custom_call.1']
    #allocation7 [shape = 's32[1]{0}', space=sflag, size = 0x4, scoped, tag = 'scoped memory for tpu_custom_call.1']
    #allocation8 [shape = 'u8[8192]{0}', space=vmem, size = 0x2000, scoped, tag = 'input window, operand 1, single buffered']
    #allocation9 [shape = 's32[1]{0}', space=sflag, size = 0x4, scoped, tag = 'scoped memory for tpu_custom_call.1']
    #allocation10 [shape = 'u8[65536]{0}', space=vmem, size = 0x10000, scoped, tag = 'input window, operand 2, single buffered']
    #allocation11 [shape = 'u8[65536]{0}', space=vmem, size = 0x10000, scoped, tag = 'input window, operand 3, single buffered']
    #allocation12 [shape = 's32[1]{0}', space=sflag, size = 0x4, scoped, tag = 'scoped memory for tpu_custom_call.1']
    #allocation13 [shape = 'u8[65536]{0}', space=vmem, size = 0x10000, scoped, tag = 'input window, operand 4, single buffered']
    #allocation14 [shape = 'u8[1024]{0}', space=vmem, size = 0x400, scoped, tag = 'input window, operand 5, single buffered']
    #allocation15 [shape = 's32[1]{0}', space=sflag, size = 0x4, scoped, tag = 'scoped memory for tpu_custom_call.1']
    #allocation16 [shape = 'u8[393216]{0}', space=vmem, size = 0x60000, scoped, tag = 'input window, operand 6, single buffered']
    #allocation17 [shape = 'u8[196608]{0}', space=vmem, size = 0x30000, scoped, tag = 'input window, operand 7, single buffered']
    #allocation18 [shape = 's32[1]{0}', space=sflag, size = 0x4, scoped, tag = 'scoped memory for tpu_custom_call.1']
    #allocation19 [shape = 'u8[131072]{0}', space=vmem, size = 0x20000, scoped, tag = 'input window, operand 9, single buffered']
    #allocation20 [shape = 'u8[8192]{0}', space=vmem, size = 0x2000, scoped, tag = 'output window, operand 0, single buffered']
    #allocation21 [shape = 'u8[8192]{0}', space=vmem, size = 0x2000, scoped, tag = 'output window, operand 1, single buffered']
    #allocation22 [shape = 's32[1]{0}', space=sflag, size = 0x4, scoped, tag = 'scoped memory for tpu_custom_call.1']
    %18 = vsyncpa [#allocation6], 0
    %19 = vsyncpa [#allocation9], 0
    %20 = vsyncpa [#allocation12], 0
    %21 = vsyncpa [#allocation15], 0
    %22 = vsyncpa [#allocation18], 0
    %23 = vsyncpa [#allocation7], 0
    %24 = vsyncpa [#allocation22], 0
    // Predicated region
    $region2: #{tpu_custom_call.1} parent=1 // pred_check
      _
    $region3: #{tpu_custom_call.1} parent=1 // pred_check_branch
      %26 = sbr.rel (0) target = $region5
    $region4: #{tpu_custom_call.1} parent=1 // pred_region
      %28 = vsyncadd [#allocation6], 0
      %s29 = sshll.u32 %s0, 4
      %s30 = int_to_ptr.hbm [resolvable:$true] %s29
      %s31 = sshll.u32 [#allocation5], 4
      %s32 = int_to_ptr.vmem [resolvable:$true] %s31
      %37 = dma.hbm_to_vmem [thread:$0]  %s30, 256, %s32, [#allocation6], 128, 128, 8
    $region5: #{tpu_custom_call.1} parent=1 // pred_fallthru
      _
    // Predicated region
    $region6: #{tpu_custom_call.1} parent=1 // pred_check
      _
    $region7: #{tpu_custom_call.1} parent=1 // pred_check_branch
      %39 = sbr.rel (0) target = $region9
    $region8: #{tpu_custom_call.1} parent=1 // pred_region
      %41 = vsyncadd [#allocation9], 0
      %s42 = sshll.u32 %s1, 4
      %s43 = int_to_ptr.hbm [resolvable:$true] %s42
      %s44 = sshll.u32 [#allocation8], 4
      %s45 = int_to_ptr.vmem [resolvable:$true] %s44
      %50 = dma.hbm_to_vmem [thread:$0]  %s43, 256, %s45, [#allocation9], 128, 128, 8
    $region9: #{tpu_custom_call.1} parent=1 // pred_fallthru
      _
    // Predicated region
    $region10: #{tpu_custom_call.1} parent=1 // pred_check
      _
    $region11: #{tpu_custom_call.1} parent=1 // pred_check_branch
      %52 = sbr.rel (0) target = $region13
    $region12: #{tpu_custom_call.1} parent=1 // pred_region
      %54 = vsyncadd [#allocation9], 0
      %s55 = sshll.u32 %s2, 4
      %s56 = int_to_ptr.hbm [resolvable:$true] %s55
      %s57 = sshll.u32 [#allocation10], 4
      %s58 = int_to_ptr.vmem [resolvable:$true] %s57
      %63 = dma.hbm_to_vmem [thread:$0]  %s56, 2048, %s58, [#allocation9], 128, 128, 8
    $region13: #{tpu_custom_call.1} parent=1 // pred_fallthru
      _
    // Predicated region
    $region14: #{tpu_custom_call.1} parent=1 // pred_check
      _
    $region15: #{tpu_custom_call.1} parent=1 // pred_check_branch
      %65 = sbr.rel (0) target = $region17
    $region16: #{tpu_custom_call.1} parent=1 // pred_region
      %67 = vsyncadd [#allocation12], 0
      %s68 = sshll.u32 %s3, 4
      %s69 = int_to_ptr.hbm [resolvable:$true] %s68
      %s70 = sshll.u32 [#allocation11], 4
      %s71 = int_to_ptr.vmem [resolvable:$true] %s70
      %76 = dma.hbm_to_vmem [thread:$0]  %s69, 2048, %s71, [#allocation12], 128, 128, 8
    $region17: #{tpu_custom_call.1} parent=1 // pred_fallthru
      _
    // Predicated region
    $region18: #{tpu_custom_call.1} parent=1 // pred_check
      _
    $region19: #{tpu_custom_call.1} parent=1 // pred_check_branch
      %78 = sbr.rel (0) target = $region21
    $region20: #{tpu_custom_call.1} parent=1 // pred_region
      %80 = vsyncadd [#allocation12], 0
      %s81 = sshll.u32 %s4, 4
      %s82 = int_to_ptr.hbm [resolvable:$true] %s81
      %s83 = sshll.u32 [#allocation13], 4
      %s84 = int_to_ptr.vmem [resolvable:$true] %s83
      %89 = dma.hbm_to_vmem [thread:$0]  %s82, 2048, %s84, [#allocation12], 128, 128, 8
    $region21: #{tpu_custom_call.1} parent=1 // pred_fallthru
      _
    // Predicated region
    $region22: #{tpu_custom_call.1} parent=1 // pred_check
      _
    $region23: #{tpu_custom_call.1} parent=1 // pred_check_branch
      %91 = sbr.rel (0) target = $region25
    $region24: #{tpu_custom_call.1} parent=1 // pred_region
      %93 = vsyncadd [#allocation15], 0
      %s95 = sshll.u32 %s5, 4
      %s96 = int_to_ptr.hbm [resolvable:$true] %s95
      %s97 = sshll.u32 [#allocation14], 4
      %s98 = int_to_ptr.vmem [resolvable:$true] %s97
      %100 = dma.hbm_to_vmem [thread:$0]  %s96, 32, %s98, [#allocation15]
    $region25: #{tpu_custom_call.1} parent=1 // pred_fallthru
      _
    // Predicated region
    $region26: #{tpu_custom_call.1} parent=1 // pred_check
      _
    $region27: #{tpu_custom_call.1} parent=1 // pred_check_branch
      %102 = sbr.rel (0) target = $region29
    $region28: #{tpu_custom_call.1} parent=1 // pred_region
      %104 = vsyncadd [#allocation15], 0
      %s105 = sshll.u32 %s6, 4
      %s106 = int_to_ptr.hbm [resolvable:$true] %s105
      %s107 = sshll.u32 [#allocation16], 4
      %s108 = int_to_ptr.vmem [resolvable:$true] %s107
      %113 = dma.hbm_to_vmem [thread:$0]  %s106, 12288, %s108, [#allocation15], 384, 384, 24
    $region29: #{tpu_custom_call.1} parent=1 // pred_fallthru
      _
    // Predicated region
    $region30: #{tpu_custom_call.1} parent=1 // pred_check
      _
    $region31: #{tpu_custom_call.1} parent=1 // pred_check_branch
      %115 = sbr.rel (0) target = $region33
    $region32: #{tpu_custom_call.1} parent=1 // pred_region
      %117 = vsyncadd [#allocation18], 0
      %s118 = sshll.u32 %s7, 4
      %s119 = int_to_ptr.hbm [resolvable:$true] %s118
      %s120 = sshll.u32 [#allocation17], 4
      %s121 = int_to_ptr.vmem [resolvable:$true] %s120
      %126 = dma.hbm_to_vmem [thread:$0]  %s119, 6144, %s121, [#allocation18], 384, 384, 24
    $region33: #{tpu_custom_call.1} parent=1 // pred_fallthru
      _
    // Predicated region
    $region34: #{tpu_custom_call.1} parent=1 // pred_check
      _
    $region35: #{tpu_custom_call.1} parent=1 // pred_check_branch
      %128 = sbr.rel (0) target = $region37
    $region36: #{tpu_custom_call.1} parent=1 // pred_region
      _
    $region37: #{tpu_custom_call.1} parent=1 // pred_fallthru
      _
    // Predicated region
    $region38: #{tpu_custom_call.1} parent=1 // pred_check
      _
    $region39: #{tpu_custom_call.1} parent=1 // pred_check_branch
      %130 = sbr.rel (0) target = $region41
    $region40: #{tpu_custom_call.1} parent=1 // pred_region
      %132 = vsyncadd [#allocation18], 0
      %s133 = sshll.u32 %s9, 4
      %s134 = int_to_ptr.hbm [resolvable:$true] %s133
      %s135 = sshll.u32 [#allocation19], 4
      %s136 = int_to_ptr.vmem [resolvable:$true] %s135
      %141 = dma.hbm_to_vmem [thread:$0]  %s134, 4096, %s136, [#allocation18], 128, 128, 8
    $region41: #{tpu_custom_call.1} parent=1 // pred_fallthru
      _
    // Predicated region
    $region42: #{tpu_custom_call.1} parent=1 // pred_check
      _
    $region43: #{tpu_custom_call.1} parent=1 // pred_check_branch
      %143 = sbr.rel (0) target = $region45
    $region44: #{tpu_custom_call.1} parent=1 // pred_region
      _
    $region45: #{tpu_custom_call.1} parent=1 // pred_fallthru
      _
    // Predicated region
    $region46: #{tpu_custom_call.1} parent=1 // pred_check
      _
    $region47: #{tpu_custom_call.1} parent=1 // pred_check_branch
      %145 = sbr.rel (0) target = $region49
    $region48: #{tpu_custom_call.1} parent=1 // pred_region
      %147 = dma.done [#allocation6], 256
    $region49: #{tpu_custom_call.1} parent=1 // pred_fallthru
      _
    // Predicated region
    $region50: #{tpu_custom_call.1} parent=1 // pred_check
      _
    $region51: #{tpu_custom_call.1} parent=1 // pred_check_branch
      %149 = sbr.rel (0) target = $region53
    $region52: #{tpu_custom_call.1} parent=1 // pred_region
      %151 = dma.done [#allocation9], 256
    $region53: #{tpu_custom_call.1} parent=1 // pred_fallthru
      _
    // Predicated region
    $region54: #{tpu_custom_call.1} parent=1 // pred_check
      _
    $region55: #{tpu_custom_call.1} parent=1 // pred_check_branch
      %153 = sbr.rel (0) target = $region57
    $region56: #{tpu_custom_call.1} parent=1 // pred_region
      %155 = dma.done [#allocation9], 2048
    $region57: #{tpu_custom_call.1} parent=1 // pred_fallthru
      _
    // Predicated region
    $region58: #{tpu_custom_call.1} parent=1 // pred_check
      _
    $region59: #{tpu_custom_call.1} parent=1 // pred_check_branch
      %157 = sbr.rel (0) target = $region61
    $region60: #{tpu_custom_call.1} parent=1 // pred_region
      %159 = dma.done [#allocation12], 2048
    $region61: #{tpu_custom_call.1} parent=1 // pred_fallthru
      _
    // Predicated region
    $region62: #{tpu_custom_call.1} parent=1 // pred_check
      _
    $region63: #{tpu_custom_call.1} parent=1 // pred_check_branch
      %161 = sbr.rel (0) target = $region65
    $region64: #{tpu_custom_call.1} parent=1 // pred_region
      %163 = dma.done [#allocation12], 2048
    $region65: #{tpu_custom_call.1} parent=1 // pred_fallthru
      _
    // Predicated region
    $region66: #{tpu_custom_call.1} parent=1 // pred_check
      _
    $region67: #{tpu_custom_call.1} parent=1 // pred_check_branch
      %165 = sbr.rel (0) target = $region69
    $region68: #{tpu_custom_call.1} parent=1 // pred_region
      %167 = dma.done [#allocation15], 32
    $region69: #{tpu_custom_call.1} parent=1 // pred_fallthru
      _
    // Predicated region
    $region70: #{tpu_custom_call.1} parent=1 // pred_check
      _
    $region71: #{tpu_custom_call.1} parent=1 // pred_check_branch
      %169 = sbr.rel (0) target = $region73
    $region72: #{tpu_custom_call.1} parent=1 // pred_region
      %171 = dma.done [#allocation15], 12288
    $region73: #{tpu_custom_call.1} parent=1 // pred_fallthru
      _
    // Predicated region
    $region74: #{tpu_custom_call.1} parent=1 // pred_check
      _
    $region75: #{tpu_custom_call.1} parent=1 // pred_check_branch
      %173 = sbr.rel (0) target = $region77
    $region76: #{tpu_custom_call.1} parent=1 // pred_region
      %175 = dma.done [#allocation18], 6144
    $region77: #{tpu_custom_call.1} parent=1 // pred_fallthru
      _
    // Predicated region
    $region78: #{tpu_custom_call.1} parent=1 // pred_check
      _
    $region79: #{tpu_custom_call.1} parent=1 // pred_check_branch
      %177 = sbr.rel (0) target = $region81
    $region80: #{tpu_custom_call.1} parent=1 // pred_region
      %179 = dma.done [#allocation18], 4096
    $region81: #{tpu_custom_call.1} parent=1 // pred_fallthru
      _
    %p180 = scmp.eq.s32.totalorder 0, 0
    // Predicated region
    $region82: #{tpu_custom_call.1} parent=1 // pred_check
      %p181 = pneg %p180
    $region83: #{tpu_custom_call.1} parent=1 // pred_check_branch
      %183 = sbr.rel (%p181) target = $region85
    $region84: #{tpu_custom_call.1} parent=1 // pred_region
      %v184 = vld [vmem:[#allocation5] sm:$0xff]
      %v185 = vld [vmem:[#allocation5 + $0x8] sm:$0xff]
      %v186 = vld [vmem:[#allocation8] sm:$0xff]
      %v187 = vld [vmem:[#allocation8 + $0x8] sm:$0xff]
      %v188 = vld [vmem:[#allocation10] sm:$0xff]
      %v189 = vld [vmem:[#allocation10 + $0x8] sm:$0xff]
      %v190 = vld [vmem:[#allocation10 + $0x10] sm:$0xff]
      %v191 = vld [vmem:[#allocation10 + $0x18] sm:$0xff]
      %v192 = vld [vmem:[#allocation10 + $0x20] sm:$0xff]
      %v193 = vld [vmem:[#allocation10 + $0x28] sm:$0xff]
      %v194 = vld [vmem:[#allocation10 + $0x30] sm:$0xff]
      %v195 = vld [vmem:[#allocation10 + $0x38] sm:$0xff]
      %v196 = vld [vmem:[#allocation10 + $0x40] sm:$0xff]
      %v197 = vld [vmem:[#allocation10 + $0x48] sm:$0xff]
      %v198 = vld [vmem:[#allocation10 + $0x50] sm:$0xff]
      %v199 = vld [vmem:[#allocation10 + $0x58] sm:$0xff]
      %v200 = vld [vmem:[#allocation10 + $0x60] sm:$0xff]
      %v201 = vld [vmem:[#allocation10 + $0x68] sm:$0xff]
      %v202 = vld [vmem:[#allocation10 + $0x70] sm:$0xff]
      %v203 = vld [vmem:[#allocation10 + $0x78] sm:$0xff]
      %v204 = vld [vmem:[#allocation14] sm:$0x3]
      %v205 = vld [vmem:[#allocation11] sm:$0xff]
      %v206 = vld [vmem:[#allocation11 + $0x8] sm:$0xff]
      %v207 = vld [vmem:[#allocation11 + $0x10] sm:$0xff]
      %v208 = vld [vmem:[#allocation11 + $0x18] sm:$0xff]
      %v209 = vld [vmem:[#allocation11 + $0x20] sm:$0xff]
      %v210 = vld [vmem:[#allocation11 + $0x28] sm:$0xff]
      %v211 = vld [vmem:[#allocation11 + $0x30] sm:$0xff]
      %v212 = vld [vmem:[#allocation11 + $0x38] sm:$0xff]
      %v213 = vld [vmem:[#allocation11 + $0x40] sm:$0xff]
      %v214 = vld [vmem:[#allocation11 + $0x48] sm:$0xff]
      %v215 = vld [vmem:[#allocation11 + $0x50] sm:$0xff]
      %v216 = vld [vmem:[#allocation11 + $0x58] sm:$0xff]
      %v217 = vld [vmem:[#allocation11 + $0x60] sm:$0xff]
      %v218 = vld [vmem:[#allocation11 + $0x68] sm:$0xff]
      %v219 = vld [vmem:[#allocation11 + $0x70] sm:$0xff]
      %v220 = vld [vmem:[#allocation11 + $0x78] sm:$0xff]
      %221 = vmatpush.msra.mxu0 %v220
      %222 = vmatpush.msra.mxu0 %v219
      %223 = vmatpush.msra.mxu0 %v218
      %224 = vmatpush.msra.mxu0 %v217
      %225 = vmatpush.msra.mxu0 %v216
      %226 = vmatpush.msra.mxu0 %v215
      %227 = vmatpush.msra.mxu0 %v214
      %228 = vmatpush.msra.mxu0 %v213
      %229 = vmatpush.msra.mxu0 %v212
      %230 = vmatpush.msra.mxu0 %v211
      %231 = vmatpush.msra.mxu0 %v210
      %232 = vmatpush.msra.mxu0 %v209
      %233 = vmatpush.msra.mxu0 %v208
      %234 = vmatpush.msra.mxu0 %v207
      %235 = vmatpush.msra.mxu0 %v206
      %236 = vmatpush.msra.mxu0 %v205
      %237 = vmatmul.f32.gmra.mxu0 %v186
      %v238 = vpop.f32.mrf.mxu0
      %v239 = vadd.f32 0.0, %v238
      %240 = vmatmul.f32.gmra.mxu0 %v187
      %v241 = vpop.f32.mrf.mxu0
      %v242 = vadd.f32 0.0, %v241
      %243 = vdwg.mxu0
      %v244 = vld [vmem:[#allocation13] sm:$0xff]
      %v245 = vld [vmem:[#allocation13 + $0x8] sm:$0xff]
      %v246 = vld [vmem:[#allocation13 + $0x10] sm:$0xff]
      %v247 = vld [vmem:[#allocation13 + $0x18] sm:$0xff]
      %v248 = vld [vmem:[#allocation13 + $0x20] sm:$0xff]
      %v249 = vld [vmem:[#allocation13 + $0x28] sm:$0xff]
      %v250 = vld [vmem:[#allocation13 + $0x30] sm:$0xff]
      %v251 = vld [vmem:[#allocation13 + $0x38] sm:$0xff]
      %v252 = vld [vmem:[#allocation13 + $0x40] sm:$0xff]
      %v253 = vld [vmem:[#allocation13 + $0x48] sm:$0xff]
      %v254 = vld [vmem:[#allocation13 + $0x50] sm:$0xff]
      %v255 = vld [vmem:[#allocation13 + $0x58] sm:$0xff]
      %v256 = vld [vmem:[#allocation13 + $0x60] sm:$0xff]
      %v257 = vld [vmem:[#allocation13 + $0x68] sm:$0xff]
      %v258 = vld [vmem:[#allocation13 + $0x70] sm:$0xff]
      %v259 = vld [vmem:[#allocation13 + $0x78] sm:$0xff]
      %260 = vmatpush.msra.mxu0 %v259
      %261 = vmatpush.msra.mxu0 %v258
      %262 = vmatpush.msra.mxu0 %v257
      %263 = vmatpush.msra.mxu0 %v256
      %264 = vmatpush.msra.mxu0 %v255
      %265 = vmatpush.msra.mxu0 %v254
      %266 = vmatpush.msra.mxu0 %v253
      %267 = vmatpush.msra.mxu0 %v252
      %268 = vmatpush.msra.mxu0 %v251
      %269 = vmatpush.msra.mxu0 %v250
      %270 = vmatpush.msra.mxu0 %v249
      %271 = vmatpush.msra.mxu0 %v248
      %272 = vmatpush.msra.mxu0 %v247
      %273 = vmatpush.msra.mxu0 %v246
      %274 = vmatpush.msra.mxu0 %v245
      %275 = vmatpush.msra.mxu0 %v244
      %276 = vmatmul.f32.gmra.mxu0 %v188
      %v277 = vpop.f32.mrf.mxu0
      %v278 = vadd.f32 0.0, %v277
      %279 = vmatmul.f32.gmra.mxu0 %v189
      %v280 = vpop.f32.mrf.mxu0
      %v281 = vadd.f32 0.0, %v280
      %282 = vmatmul.f32.gmra.mxu0 %v190
      %v283 = vpop.f32.mrf.mxu0
      %v284 = vadd.f32 0.0, %v283
      %285 = vmatmul.f32.gmra.mxu0 %v191
      %v286 = vpop.f32.mrf.mxu0
      %v287 = vadd.f32 0.0, %v286
      %288 = vmatmul.f32.gmra.mxu0 %v192
      %v289 = vpop.f32.mrf.mxu0
      %v290 = vadd.f32 0.0, %v289
      %291 = vmatmul.f32.gmra.mxu0 %v193
      %v292 = vpop.f32.mrf.mxu0
      %v293 = vadd.f32 0.0, %v292
      %294 = vmatmul.f32.gmra.mxu0 %v194
      %v295 = vpop.f32.mrf.mxu0
      %v296 = vadd.f32 0.0, %v295
      %297 = vmatmul.f32.gmra.mxu0 %v195
      %v298 = vpop.f32.mrf.mxu0
      %v299 = vadd.f32 0.0, %v298
      %300 = vmatmul.f32.gmra.mxu0 %v196
      %v301 = vpop.f32.mrf.mxu0
      %v302 = vadd.f32 0.0, %v301
      %303 = vmatmul.f32.gmra.mxu0 %v197
      %v304 = vpop.f32.mrf.mxu0
      %v305 = vadd.f32 0.0, %v304
      %306 = vmatmul.f32.gmra.mxu0 %v198
      %v307 = vpop.f32.mrf.mxu0
      %v308 = vadd.f32 0.0, %v307
      %309 = vmatmul.f32.gmra.mxu0 %v199
      %v310 = vpop.f32.mrf.mxu0
      %v311 = vadd.f32 0.0, %v310
      %312 = vmatmul.f32.gmra.mxu0 %v200
      %v313 = vpop.f32.mrf.mxu0
      %v314 = vadd.f32 0.0, %v313
      %315 = vmatmul.f32.gmra.mxu0 %v201
      %v316 = vpop.f32.mrf.mxu0
      %v317 = vadd.f32 0.0, %v316
      %318 = vmatmul.f32.gmra.mxu0 %v202
      %v319 = vpop.f32.mrf.mxu0
      %v320 = vadd.f32 0.0, %v319
      %321 = vmatmul.f32.gmra.mxu0 %v203
      %v322 = vpop.f32.mrf.mxu0
      %v323 = vadd.f32 0.0, %v322
      %324 = vdwg.mxu0
      %v327 = vrot.slane %v239, 1
      %v328 = vrot.slane %v239, 2
      %v329 = vrot.slane %v239, 3
      %v330 = vrot.slane %v239, 4
      %v331 = vrot.slane %v239, 5
      %v332 = vrot.slane %v239, 6
      %v333 = vrot.slane %v239, 7
      %v334 = vrot.slane %v242, 1
      %v335 = vrot.slane %v242, 2
      %v336 = vrot.slane %v242, 3
      %v337 = vrot.slane %v242, 4
      %v338 = vrot.slane %v242, 5
      %v339 = vrot.slane %v242, 6
      %v340 = vrot.slane %v242, 7
      %v341 = vperm.slane %v239, 0
      %v342 = vperm.slane %v327, 0
      %v343 = vperm.slane %v328, 0
      %v344 = vperm.slane %v329, 0
      %v345 = vperm.slane %v330, 0
      %v346 = vperm.slane %v331, 0
      %v347 = vperm.slane %v332, 0
      %v348 = vperm.slane %v333, 0
      %v349 = vperm.slane %v242, 0
      %v350 = vperm.slane %v334, 0
      %v351 = vperm.slane %v335, 0
      %v352 = vperm.slane %v336, 0
      %v353 = vperm.slane %v337, 0
      %v354 = vperm.slane %v338, 0
      %v355 = vperm.slane %v339, 0
      %v356 = vperm.slane %v340, 0
      %v373 = vadd.f32 %v341, %v278
      %v374 = vadd.f32 %v342, %v281
      %v375 = vadd.f32 %v343, %v284
      %v376 = vadd.f32 %v344, %v287
      %v377 = vadd.f32 %v345, %v290
      %v378 = vadd.f32 %v346, %v293
      %v379 = vadd.f32 %v347, %v296
      %v380 = vadd.f32 %v348, %v299
      %v381 = vadd.f32 %v349, %v302
      %v382 = vadd.f32 %v350, %v305
      %v383 = vadd.f32 %v351, %v308
      %v384 = vadd.f32 %v352, %v311
      %v385 = vadd.f32 %v353, %v314
      %v386 = vadd.f32 %v354, %v317
      %v387 = vadd.f32 %v355, %v320
      %v388 = vadd.f32 %v356, %v323
      %v389 = vperm.slane %v204, 0
      %v390 = vadd.f32 %v373, %v389
      %v391 = vadd.f32 %v374, %v389
      %v392 = vadd.f32 %v375, %v389
      %v393 = vadd.f32 %v376, %v389
      %v394 = vadd.f32 %v377, %v389
      %v395 = vadd.f32 %v378, %v389
      %v396 = vadd.f32 %v379, %v389
      %v397 = vadd.f32 %v380, %v389
      %v398 = vadd.f32 %v381, %v389
      %v399 = vadd.f32 %v382, %v389
      %v400 = vadd.f32 %v383, %v389
      %v401 = vadd.f32 %v384, %v389
      %v402 = vadd.f32 %v385, %v389
      %v403 = vadd.f32 %v386, %v389
      %v404 = vadd.f32 %v387, %v389
      %v405 = vadd.f32 %v388, %v389
      %v406 = vmax.f32 %v390, 0.0
      %v407 = vmax.f32 %v391, 0.0
      %v408 = vmax.f32 %v392, 0.0
      %v409 = vmax.f32 %v393, 0.0
      %v410 = vmax.f32 %v394, 0.0
      %v411 = vmax.f32 %v395, 0.0
      %v412 = vmax.f32 %v396, 0.0
      %v413 = vmax.f32 %v397, 0.0
      %v414 = vmax.f32 %v398, 0.0
      %v415 = vmax.f32 %v399, 0.0
      %v416 = vmax.f32 %v400, 0.0
      %v417 = vmax.f32 %v401, 0.0
      %v418 = vmax.f32 %v402, 0.0
      %v419 = vmax.f32 %v403, 0.0
      %v420 = vmax.f32 %v404, 0.0
      %v421 = vmax.f32 %v405, 0.0
      %v422 = vperm.slane %v204, 1
      %v423 = vmul.f32 %v406, %v422
      %v424 = vmul.f32 %v407, %v422
      %v425 = vmul.f32 %v408, %v422
      %v426 = vmul.f32 %v409, %v422
      %v427 = vmul.f32 %v410, %v422
      %v428 = vmul.f32 %v411, %v422
      %v429 = vmul.f32 %v412, %v422
      %v430 = vmul.f32 %v413, %v422
      %v431 = vmul.f32 %v414, %v422
      %v432 = vmul.f32 %v415, %v422
      %v433 = vmul.f32 %v416, %v422
      %v434 = vmul.f32 %v417, %v422
      %v435 = vmul.f32 %v418, %v422
      %v436 = vmul.f32 %v419, %v422
      %v437 = vmul.f32 %v420, %v422
      %v438 = vmul.f32 %v421, %v422
      %439 = vadd.xlane.f32.xlu0 %v423
      %v440 = vpop.xlane.xlu0 %439
      %441 = vadd.xlane.f32.xlu0 %v424
      %v442 = vpop.xlane.xlu0 %441
      %443 = vadd.xlane.f32.xlu0 %v425
      %v444 = vpop.xlane.xlu0 %443
      %445 = vadd.xlane.f32.xlu0 %v426
      %v446 = vpop.xlane.xlu0 %445
      %447 = vadd.xlane.f32.xlu0 %v427
      %v448 = vpop.xlane.xlu0 %447
      %449 = vadd.xlane.f32.xlu0 %v428
      %v450 = vpop.xlane.xlu0 %449
      %451 = vadd.xlane.f32.xlu0 %v429
      %v452 = vpop.xlane.xlu0 %451
      %453 = vadd.xlane.f32.xlu0 %v430
      %v454 = vpop.xlane.xlu0 %453
      %455 = vadd.xlane.f32.xlu0 %v431
      %v456 = vpop.xlane.xlu0 %455
      %457 = vadd.xlane.f32.xlu0 %v432
      %v458 = vpop.xlane.xlu0 %457
      %459 = vadd.xlane.f32.xlu0 %v433
      %v460 = vpop.xlane.xlu0 %459
      %461 = vadd.xlane.f32.xlu0 %v434
      %v462 = vpop.xlane.xlu0 %461
      %463 = vadd.xlane.f32.xlu0 %v435
      %v464 = vpop.xlane.xlu0 %463
      %465 = vadd.xlane.f32.xlu0 %v436
      %v466 = vpop.xlane.xlu0 %465
      %467 = vadd.xlane.f32.xlu0 %v437
      %v468 = vpop.xlane.xlu0 %467
      %469 = vadd.xlane.f32.xlu0 %v438
      %v470 = vpop.xlane.xlu0 %469
      %v487 = vlaneseq
      %v488 = vand.u32 %v487, 127
      %v489 = vperm.slane %v440, %v488
      %v490 = vperm.slane %v442, %v488
      %v491 = vperm.slane %v444, %v488
      %v492 = vperm.slane %v446, %v488
      %v493 = vperm.slane %v448, %v488
      %v494 = vperm.slane %v450, %v488
      %v495 = vperm.slane %v452, %v488
      %v496 = vperm.slane %v454, %v488
      %v497 = vperm.slane %v456, %v488
      %v498 = vperm.slane %v458, %v488
      %v499 = vperm.slane %v460, %v488
      %v500 = vperm.slane %v462, %v488
      %v501 = vperm.slane %v464, %v488
      %v502 = vperm.slane %v466, %v488
      %v503 = vperm.slane %v468, %v488
      %v504 = vperm.slane %v470, %v488
      %vm505 = vcmask 1041409
      %v506 = vsel %vm505, %v490, %v489
      %vm507 = vcmask 1042434
      %v508 = vsel %vm507, %v491, %v506
      %vm509 = vcmask 1043459
      %v510 = vsel %vm509, %v492, %v508
      %vm511 = vcmask 1044484
      %v512 = vsel %vm511, %v493, %v510
      %vm513 = vcmask 1045509
      %v514 = vsel %vm513, %v494, %v512
      %vm515 = vcmask 1046534
      %v516 = vsel %vm515, %v495, %v514
      %vm517 = vcmask 1047559
      %v518 = vsel %vm517, %v496, %v516
      %v519 = vsel %vm505, %v498, %v497
      %v520 = vsel %vm507, %v499, %v519
      %v521 = vsel %vm509, %v500, %v520
      %v522 = vsel %vm511, %v501, %v521
      %v523 = vsel %vm513, %v502, %v522
      %v524 = vsel %vm515, %v503, %v523
      %v525 = vsel %vm517, %v504, %v524
      %vm528 = vcmask 64512
      %v529 = vsel %vm528, %v518, -inf
      %530 = vmax.xlane.f32.xlu0 %v529
      %v531 = vpop.xlane.xlu0 %530
      %v532 = vsel %vm528, %v525, -inf
      %533 = vmax.xlane.f32.xlu0 %v532
      %v534 = vpop.xlane.xlu0 %533
      %v537 = vperm.slane %v531, 0
      %v538 = vperm.slane %v531, 1
      %v539 = vperm.slane %v531, 2
      %v540 = vperm.slane %v531, 3
      %v541 = vperm.slane %v531, 4
      %v542 = vperm.slane %v531, 5
      %v543 = vperm.slane %v531, 6
      %v544 = vperm.slane %v531, 7
      %v545 = vperm.slane %v534, 0
      %v546 = vperm.slane %v534, 1
      %v547 = vperm.slane %v534, 2
      %v548 = vperm.slane %v534, 3
      %v549 = vperm.slane %v534, 4
      %v550 = vperm.slane %v534, 5
      %v551 = vperm.slane %v534, 6
      %v552 = vperm.slane %v534, 7
      %v569 = vsub.f32 %v440, %v537
      %v570 = vsub.f32 %v442, %v538
      %v571 = vsub.f32 %v444, %v539
      %v572 = vsub.f32 %v446, %v540
      %v573 = vsub.f32 %v448, %v541
      %v574 = vsub.f32 %v450, %v542
      %v575 = vsub.f32 %v452, %v543
      %v576 = vsub.f32 %v454, %v544
      %v577 = vsub.f32 %v456, %v545
      %v578 = vsub.f32 %v458, %v546
      %v579 = vsub.f32 %v460, %v547
      %v580 = vsub.f32 %v462, %v548
      %v581 = vsub.f32 %v464, %v549
      %v582 = vsub.f32 %v466, %v550
      %v583 = vsub.f32 %v468, %v551
      %v584 = vsub.f32 %v470, %v552
      %v585 = vmul.f32 %v569, 1.442695
      %v586 = vpow.pop %v585
      %v587 = vmul.f32 %v570, 1.442695
      %v588 = vpow.pop %v587
      %v589 = vmul.f32 %v571, 1.442695
      %v590 = vpow.pop %v589
      %v591 = vmul.f32 %v572, 1.442695
      %v592 = vpow.pop %v591
      %v593 = vmul.f32 %v573, 1.442695
      %v594 = vpow.pop %v593
      %v595 = vmul.f32 %v574, 1.442695
      %v596 = vpow.pop %v595
      %v597 = vmul.f32 %v575, 1.442695
      %v598 = vpow.pop %v597
      %v599 = vmul.f32 %v576, 1.442695
      %v600 = vpow.pop %v599
      %v601 = vmul.f32 %v577, 1.442695
      %v602 = vpow.pop %v601
      %v603 = vmul.f32 %v578, 1.442695
      %v604 = vpow.pop %v603
      %v605 = vmul.f32 %v579, 1.442695
      %v606 = vpow.pop %v605
      %v607 = vmul.f32 %v580, 1.442695
      %v608 = vpow.pop %v607
      %v609 = vmul.f32 %v581, 1.442695
      %v610 = vpow.pop %v609
      %v611 = vmul.f32 %v582, 1.442695
      %v612 = vpow.pop %v611
      %v613 = vmul.f32 %v583, 1.442695
      %v614 = vpow.pop %v613
      %v615 = vmul.f32 %v584, 1.442695
      %v616 = vpow.pop %v615
      %633 = vset.pattern.permute.xlu0 0
      %634 = vperm.xlu0 %633, %v586
      %v635 = vpop.permute.xlu0 %634
      %636 = vset.pattern.permute.xlu0 0
      %637 = vperm.xlu0 %636, %v588
      %v638 = vpop.permute.xlu0 %637
      %639 = vset.pattern.permute.xlu0 0
      %640 = vperm.xlu0 %639, %v590
      %v641 = vpop.permute.xlu0 %640
      %642 = vset.pattern.permute.xlu0 0
      %643 = vperm.xlu0 %642, %v592
      %v644 = vpop.permute.xlu0 %643
      %645 = vset.pattern.permute.xlu0 0
      %646 = vperm.xlu0 %645, %v594
      %v647 = vpop.permute.xlu0 %646
      %648 = vset.pattern.permute.xlu0 0
      %649 = vperm.xlu0 %648, %v596
      %v650 = vpop.permute.xlu0 %649
      %651 = vset.pattern.permute.xlu0 0
      %652 = vperm.xlu0 %651, %v598
      %v653 = vpop.permute.xlu0 %652
      %654 = vset.pattern.permute.xlu0 0
      %655 = vperm.xlu0 %654, %v600
      %v656 = vpop.permute.xlu0 %655
      %657 = vset.pattern.permute.xlu0 0
      %658 = vperm.xlu0 %657, %v602
      %v659 = vpop.permute.xlu0 %658
      %660 = vset.pattern.permute.xlu0 0
      %661 = vperm.xlu0 %660, %v604
      %v662 = vpop.permute.xlu0 %661
      %663 = vset.pattern.permute.xlu0 0
      %664 = vperm.xlu0 %663, %v606
      %v665 = vpop.permute.xlu0 %664
      %666 = vset.pattern.permute.xlu0 0
      %667 = vperm.xlu0 %666, %v608
      %v668 = vpop.permute.xlu0 %667
      %669 = vset.pattern.permute.xlu0 0
      %670 = vperm.xlu0 %669, %v610
      %v671 = vpop.permute.xlu0 %670
      %672 = vset.pattern.permute.xlu0 0
      %673 = vperm.xlu0 %672, %v612
      %v674 = vpop.permute.xlu0 %673
      %675 = vset.pattern.permute.xlu0 0
      %676 = vperm.xlu0 %675, %v614
      %v677 = vpop.permute.xlu0 %676
      %678 = vset.pattern.permute.xlu0 0
      %679 = vperm.xlu0 %678, %v616
      %v680 = vpop.permute.xlu0 %679
      %v681 = vperm.slane %v635, %v488
      %v682 = vperm.slane %v638, %v488
      %v683 = vperm.slane %v641, %v488
      %v684 = vperm.slane %v644, %v488
      %v685 = vperm.slane %v647, %v488
      %v686 = vperm.slane %v650, %v488
      %v687 = vperm.slane %v653, %v488
      %v688 = vperm.slane %v656, %v488
      %v689 = vperm.slane %v659, %v488
      %v690 = vperm.slane %v662, %v488
      %v691 = vperm.slane %v665, %v488
      %v692 = vperm.slane %v668, %v488
      %v693 = vperm.slane %v671, %v488
      %v694 = vperm.slane %v674, %v488
      %v695 = vperm.slane %v677, %v488
      %v696 = vperm.slane %v680, %v488
      %v697 = vsel %vm505, %v682, %v681
      %v698 = vsel %vm507, %v683, %v697
      %v699 = vsel %vm509, %v684, %v698
      %v700 = vsel %vm511, %v685, %v699
      %v701 = vsel %vm513, %v686, %v700
      %v702 = vsel %vm515, %v687, %v701
      %v703 = vsel %vm517, %v688, %v702
      %v704 = vsel %vm505, %v690, %v689
      %v705 = vsel %vm507, %v691, %v704
      %v706 = vsel %vm509, %v692, %v705
      %v707 = vsel %vm511, %v693, %v706
      %v708 = vsel %vm513, %v694, %v707
      %v709 = vsel %vm515, %v695, %v708
      %v710 = vsel %vm517, %v696, %v709
      %v713 = vsel %vm528, %v703, 0.0
      %714 = vadd.xlane.f32.xlu0 %v713
      %v715 = vpop.xlane.xlu0 %714
      %v716 = vsel %vm528, %v710, 0.0
      %717 = vadd.xlane.f32.xlu0 %v716
      %v718 = vpop.xlane.xlu0 %717
      %v721 = vperm.slane %v715, 0
      %v722 = vperm.slane %v715, 1
      %v723 = vperm.slane %v715, 2
      %v724 = vperm.slane %v715, 3
      %v725 = vperm.slane %v715, 4
      %v726 = vperm.slane %v715, 5
      %v727 = vperm.slane %v715, 6
      %v728 = vperm.slane %v715, 7
      %v729 = vperm.slane %v718, 0
      %v730 = vperm.slane %v718, 1
      %v731 = vperm.slane %v718, 2
      %v732 = vperm.slane %v718, 3
      %v733 = vperm.slane %v718, 4
      %v734 = vperm.slane %v718, 5
      %v735 = vperm.slane %v718, 6
      %v736 = vperm.slane %v718, 7
      %v753 = vrcp.pop %v721
      %v754 = vmul.f32 %v721, %v753
      %v755 = vsub.f32 1.0, %v754
      %v756 = vmul.f32 %v753, %v755
      %v757 = vadd.f32 %v753, %v756
      %vm758 = vweird.f32 %v721
      %vm759 = vweird.f32 %v753
      %vm760 = vmor %vm758, %vm759
      %v761 = vsel %vm760, %v753, %v757
      %v762 = vand.u32 2147483647, %v721
      %vm763 = vcmp.eq.f32.partialorder %v762, 8.507059e+37
      %v764 = vand.u32 %v721, 2147483648
      %v765 = vor.u32 1.1754944e-38, %v764
      %v766 = vsel %vm763, %v765, %v761
      %v767 = vmul.f32 %v586, %v766
      %v768 = vrcp.pop %v722
      %v769 = vmul.f32 %v722, %v768
      %v770 = vsub.f32 1.0, %v769
      %v771 = vmul.f32 %v768, %v770
      %v772 = vadd.f32 %v768, %v771
      %vm773 = vweird.f32 %v722
      %vm774 = vweird.f32 %v768
      %vm775 = vmor %vm773, %vm774
      %v776 = vsel %vm775, %v768, %v772
      %v777 = vand.u32 2147483647, %v722
      %vm778 = vcmp.eq.f32.partialorder %v777, 8.507059e+37
      %v779 = vand.u32 %v722, 2147483648
      %v780 = vor.u32 1.1754944e-38, %v779
      %v781 = vsel %vm778, %v780, %v776
      %v782 = vmul.f32 %v588, %v781
      %v783 = vrcp.pop %v723
      %v784 = vmul.f32 %v723, %v783
      %v785 = vsub.f32 1.0, %v784
      %v786 = vmul.f32 %v783, %v785
      %v787 = vadd.f32 %v783, %v786
      %vm788 = vweird.f32 %v723
      %vm789 = vweird.f32 %v783
      %vm790 = vmor %vm788, %vm789
      %v791 = vsel %vm790, %v783, %v787
      %v792 = vand.u32 2147483647, %v723
      %vm793 = vcmp.eq.f32.partialorder %v792, 8.507059e+37
      %v794 = vand.u32 %v723, 2147483648
      %v795 = vor.u32 1.1754944e-38, %v794
      %v796 = vsel %vm793, %v795, %v791
      %v797 = vmul.f32 %v590, %v796
      %v798 = vrcp.pop %v724
      %v799 = vmul.f32 %v724, %v798
      %v800 = vsub.f32 1.0, %v799
      %v801 = vmul.f32 %v798, %v800
      %v802 = vadd.f32 %v798, %v801
      %vm803 = vweird.f32 %v724
      %vm804 = vweird.f32 %v798
      %vm805 = vmor %vm803, %vm804
      %v806 = vsel %vm805, %v798, %v802
      %v807 = vand.u32 2147483647, %v724
      %vm808 = vcmp.eq.f32.partialorder %v807, 8.507059e+37
      %v809 = vand.u32 %v724, 2147483648
      %v810 = vor.u32 1.1754944e-38, %v809
      %v811 = vsel %vm808, %v810, %v806
      %v812 = vmul.f32 %v592, %v811
      %v813 = vrcp.pop %v725
      %v814 = vmul.f32 %v725, %v813
      %v815 = vsub.f32 1.0, %v814
      %v816 = vmul.f32 %v813, %v815
      %v817 = vadd.f32 %v813, %v816
      %vm818 = vweird.f32 %v725
      %vm819 = vweird.f32 %v813
      %vm820 = vmor %vm818, %vm819
      %v821 = vsel %vm820, %v813, %v817
      %v822 = vand.u32 2147483647, %v725
      %vm823 = vcmp.eq.f32.partialorder %v822, 8.507059e+37
      %v824 = vand.u32 %v725, 2147483648
      %v825 = vor.u32 1.1754944e-38, %v824
      %v826 = vsel %vm823, %v825, %v821
      %v827 = vmul.f32 %v594, %v826
      %v828 = vrcp.pop %v726
      %v829 = vmul.f32 %v726, %v828
      %v830 = vsub.f32 1.0, %v829
      %v831 = vmul.f32 %v828, %v830
      %v832 = vadd.f32 %v828, %v831
      %vm833 = vweird.f32 %v726
      %vm834 = vweird.f32 %v828
      %vm835 = vmor %vm833, %vm834
      %v836 = vsel %vm835, %v828, %v832
      %v837 = vand.u32 2147483647, %v726
      %vm838 = vcmp.eq.f32.partialorder %v837, 8.507059e+37
      %v839 = vand.u32 %v726, 2147483648
      %v840 = vor.u32 1.1754944e-38, %v839
      %v841 = vsel %vm838, %v840, %v836
      %v842 = vmul.f32 %v596, %v841
      %v843 = vrcp.pop %v727
      %v844 = vmul.f32 %v727, %v843
      %v845 = vsub.f32 1.0, %v844
      %v846 = vmul.f32 %v843, %v845
      %v847 = vadd.f32 %v843, %v846
      %vm848 = vweird.f32 %v727
      %vm849 = vweird.f32 %v843
      %vm850 = vmor %vm848, %vm849
      %v851 = vsel %vm850, %v843, %v847
      %v852 = vand.u32 2147483647, %v727
      %vm853 = vcmp.eq.f32.partialorder %v852, 8.507059e+37
      %v854 = vand.u32 %v727, 2147483648
      %v855 = vor.u32 1.1754944e-38, %v854
      %v856 = vsel %vm853, %v855, %v851
      %v857 = vmul.f32 %v598, %v856
      %v858 = vrcp.pop %v728
      %v859 = vmul.f32 %v728, %v858
      %v860 = vsub.f32 1.0, %v859
      %v861 = vmul.f32 %v858, %v860
      %v862 = vadd.f32 %v858, %v861
      %vm863 = vweird.f32 %v728
      %vm864 = vweird.f32 %v858
      %vm865 = vmor %vm863, %vm864
      %v866 = vsel %vm865, %v858, %v862
      %v867 = vand.u32 2147483647, %v728
      %vm868 = vcmp.eq.f32.partialorder %v867, 8.507059e+37
      %v869 = vand.u32 %v728, 2147483648
      %v870 = vor.u32 1.1754944e-38, %v869
      %v871 = vsel %vm868, %v870, %v866
      %v872 = vmul.f32 %v600, %v871
      %v873 = vrcp.pop %v729
      %v874 = vmul.f32 %v729, %v873
      %v875 = vsub.f32 1.0, %v874
      %v876 = vmul.f32 %v873, %v875
      %v877 = vadd.f32 %v873, %v876
      %vm878 = vweird.f32 %v729
      %vm879 = vweird.f32 %v873
      %vm880 = vmor %vm878, %vm879
      %v881 = vsel %vm880, %v873, %v877
      %v882 = vand.u32 2147483647, %v729
      %vm883 = vcmp.eq.f32.partialorder %v882, 8.507059e+37
      %v884 = vand.u32 %v729, 2147483648
      %v885 = vor.u32 1.1754944e-38, %v884
      %v886 = vsel %vm883, %v885, %v881
      %v887 = vmul.f32 %v602, %v886
      %v888 = vrcp.pop %v730
      %v889 = vmul.f32 %v730, %v888
      %v890 = vsub.f32 1.0, %v889
      %v891 = vmul.f32 %v888, %v890
      %v892 = vadd.f32 %v888, %v891
      %vm893 = vweird.f32 %v730
      %vm894 = vweird.f32 %v888
      %vm895 = vmor %vm893, %vm894
      %v896 = vsel %vm895, %v888, %v892
      %v897 = vand.u32 2147483647, %v730
      %vm898 = vcmp.eq.f32.partialorder %v897, 8.507059e+37
      %v899 = vand.u32 %v730, 2147483648
      %v900 = vor.u32 1.1754944e-38, %v899
      %v901 = vsel %vm898, %v900, %v896
      %v902 = vmul.f32 %v604, %v901
      %v903 = vrcp.pop %v731
      %v904 = vmul.f32 %v731, %v903
      %v905 = vsub.f32 1.0, %v904
      %v906 = vmul.f32 %v903, %v905
      %v907 = vadd.f32 %v903, %v906
      %vm908 = vweird.f32 %v731
      %vm909 = vweird.f32 %v903
      %vm910 = vmor %vm908, %vm909
      %v911 = vsel %vm910, %v903, %v907
      %v912 = vand.u32 2147483647, %v731
      %vm913 = vcmp.eq.f32.partialorder %v912, 8.507059e+37
      %v914 = vand.u32 %v731, 2147483648
      %v915 = vor.u32 1.1754944e-38, %v914
      %v916 = vsel %vm913, %v915, %v911
      %v917 = vmul.f32 %v606, %v916
      %v918 = vrcp.pop %v732
      %v919 = vmul.f32 %v732, %v918
      %v920 = vsub.f32 1.0, %v919
      %v921 = vmul.f32 %v918, %v920
      %v922 = vadd.f32 %v918, %v921
      %vm923 = vweird.f32 %v732
      %vm924 = vweird.f32 %v918
      %vm925 = vmor %vm923, %vm924
      %v926 = vsel %vm925, %v918, %v922
      %v927 = vand.u32 2147483647, %v732
      %vm928 = vcmp.eq.f32.partialorder %v927, 8.507059e+37
      %v929 = vand.u32 %v732, 2147483648
      %v930 = vor.u32 1.1754944e-38, %v929
      %v931 = vsel %vm928, %v930, %v926
      %v932 = vmul.f32 %v608, %v931
      %v933 = vrcp.pop %v733
      %v934 = vmul.f32 %v733, %v933
      %v935 = vsub.f32 1.0, %v934
      %v936 = vmul.f32 %v933, %v935
      %v937 = vadd.f32 %v933, %v936
      %vm938 = vweird.f32 %v733
      %vm939 = vweird.f32 %v933
      %vm940 = vmor %vm938, %vm939
      %v941 = vsel %vm940, %v933, %v937
      %v942 = vand.u32 2147483647, %v733
      %vm943 = vcmp.eq.f32.partialorder %v942, 8.507059e+37
      %v944 = vand.u32 %v733, 2147483648
      %v945 = vor.u32 1.1754944e-38, %v944
      %v946 = vsel %vm943, %v945, %v941
      %v947 = vmul.f32 %v610, %v946
      %v948 = vrcp.pop %v734
      %v949 = vmul.f32 %v734, %v948
      %v950 = vsub.f32 1.0, %v949
      %v951 = vmul.f32 %v948, %v950
      %v952 = vadd.f32 %v948, %v951
      %vm953 = vweird.f32 %v734
      %vm954 = vweird.f32 %v948
      %vm955 = vmor %vm953, %vm954
      %v956 = vsel %vm955, %v948, %v952
      %v957 = vand.u32 2147483647, %v734
      %vm958 = vcmp.eq.f32.partialorder %v957, 8.507059e+37
      %v959 = vand.u32 %v734, 2147483648
      %v960 = vor.u32 1.1754944e-38, %v959
      %v961 = vsel %vm958, %v960, %v956
      %v962 = vmul.f32 %v612, %v961
      %v963 = vrcp.pop %v735
      %v964 = vmul.f32 %v735, %v963
      %v965 = vsub.f32 1.0, %v964
      %v966 = vmul.f32 %v963, %v965
      %v967 = vadd.f32 %v963, %v966
      %vm968 = vweird.f32 %v735
      %vm969 = vweird.f32 %v963
      %vm970 = vmor %vm968, %vm969
      %v971 = vsel %vm970, %v963, %v967
      %v972 = vand.u32 2147483647, %v735
      %vm973 = vcmp.eq.f32.partialorder %v972, 8.507059e+37
      %v974 = vand.u32 %v735, 2147483648
      %v975 = vor.u32 1.1754944e-38, %v974
      %v976 = vsel %vm973, %v975, %v971
      %v977 = vmul.f32 %v614, %v976
      %v978 = vrcp.pop %v736
      %v979 = vmul.f32 %v736, %v978
      %v980 = vsub.f32 1.0, %v979
      %v981 = vmul.f32 %v978, %v980
      %v982 = vadd.f32 %v978, %v981
      %vm983 = vweird.f32 %v736
      %vm984 = vweird.f32 %v978
      %vm985 = vmor %vm983, %vm984
      %v986 = vsel %vm985, %v978, %v982
      %v987 = vand.u32 2147483647, %v736
      %vm988 = vcmp.eq.f32.partialorder %v987, 8.507059e+37
      %v989 = vand.u32 %v736, 2147483648
      %v990 = vor.u32 1.1754944e-38, %v989
      %v991 = vsel %vm988, %v990, %v986
      %v992 = vmul.f32 %v616, %v991
      %994 = vset.pattern.permute.xlu0 0
      %995 = vperm.xlu0 %994, %v767
      %v996 = vpop.permute.xlu0 %995
      %999 = vset.pattern.permute.xlu0 0
      %1000 = vperm.xlu0 %999, %v782
      %v1001 = vpop.permute.xlu0 %1000
      %1004 = vset.pattern.permute.xlu0 0
      %1005 = vperm.xlu0 %1004, %v797
      %v1006 = vpop.permute.xlu0 %1005
      %1009 = vset.pattern.permute.xlu0 0
      %1010 = vperm.xlu0 %1009, %v812
      %v1011 = vpop.permute.xlu0 %1010
      %1014 = vset.pattern.permute.xlu0 0
      %1015 = vperm.xlu0 %1014, %v827
      %v1016 = vpop.permute.xlu0 %1015
      %1019 = vset.pattern.permute.xlu0 0
      %1020 = vperm.xlu0 %1019, %v842
      %v1021 = vpop.permute.xlu0 %1020
      %1024 = vset.pattern.permute.xlu0 0
      %1025 = vperm.xlu0 %1024, %v857
      %v1026 = vpop.permute.xlu0 %1025
      %1029 = vset.pattern.permute.xlu0 0
      %1030 = vperm.xlu0 %1029, %v872
      %v1031 = vpop.permute.xlu0 %1030
      %1034 = vset.pattern.permute.xlu0 0
      %1035 = vperm.xlu0 %1034, %v887
      %v1036 = vpop.permute.xlu0 %1035
      %1039 = vset.pattern.permute.xlu0 0
      %1040 = vperm.xlu0 %1039, %v902
      %v1041 = vpop.permute.xlu0 %1040
      %1044 = vset.pattern.permute.xlu0 0
      %1045 = vperm.xlu0 %1044, %v917
      %v1046 = vpop.permute.xlu0 %1045
      %1049 = vset.pattern.permute.xlu0 0
      %1050 = vperm.xlu0 %1049, %v932
      %v1051 = vpop.permute.xlu0 %1050
      %1054 = vset.pattern.permute.xlu0 0
      %1055 = vperm.xlu0 %1054, %v947
      %v1056 = vpop.permute.xlu0 %1055
      %1059 = vset.pattern.permute.xlu0 0
      %1060 = vperm.xlu0 %1059, %v962
      %v1061 = vpop.permute.xlu0 %1060
      %1064 = vset.pattern.permute.xlu0 0
      %1065 = vperm.xlu0 %1064, %v977
      %v1066 = vpop.permute.xlu0 %1065
      %1069 = vset.pattern.permute.xlu0 0
      %1070 = vperm.xlu0 %1069, %v992
      %v1071 = vpop.permute.xlu0 %1070
      %v1073 = vmul.f32 %v996, %v188
      %v1074 = vmul.f32 %v1001, %v189
      %v1075 = vmul.f32 %v1006, %v190
      %v1076 = vmul.f32 %v1011, %v191
      %v1077 = vmul.f32 %v1016, %v192
      %v1078 = vmul.f32 %v1021, %v193
      %v1079 = vmul.f32 %v1026, %v194
      %v1080 = vmul.f32 %v1031, %v195
      %v1081 = vmul.f32 %v1036, %v196
      %v1082 = vmul.f32 %v1041, %v197
      %v1083 = vmul.f32 %v1046, %v198
      %v1084 = vmul.f32 %v1051, %v199
      %v1085 = vmul.f32 %v1056, %v200
      %v1086 = vmul.f32 %v1061, %v201
      %v1087 = vmul.f32 %v1066, %v202
      %v1088 = vmul.f32 %v1071, %v203
      %v1089 = vrot.slane %v1073, 4
      %v1090 = vadd.f32 %v1073, %v1089
      %v1091 = vrot.slane %v1090, 2
      %v1092 = vadd.f32 %v1090, %v1091
      %v1093 = vrot.slane %v1092, 1
      %v1094 = vadd.f32 %v1092, %v1093
      %v1095 = vrot.slane %v1074, 4
      %v1096 = vadd.f32 %v1074, %v1095
      %v1097 = vrot.slane %v1096, 2
      %v1098 = vadd.f32 %v1096, %v1097
      %v1099 = vrot.slane %v1098, 1
      %v1100 = vadd.f32 %v1098, %v1099
      %v1101 = vrot.slane %v1075, 4
      %v1102 = vadd.f32 %v1075, %v1101
      %v1103 = vrot.slane %v1102, 2
      %v1104 = vadd.f32 %v1102, %v1103
      %v1105 = vrot.slane %v1104, 1
      %v1106 = vadd.f32 %v1104, %v1105
      %v1107 = vrot.slane %v1076, 4
      %v1108 = vadd.f32 %v1076, %v1107
      %v1109 = vrot.slane %v1108, 2
      %v1110 = vadd.f32 %v1108, %v1109
      %v1111 = vrot.slane %v1110, 1
      %v1112 = vadd.f32 %v1110, %v1111
      %v1113 = vrot.slane %v1077, 4
      %v1114 = vadd.f32 %v1077, %v1113
      %v1115 = vrot.slane %v1114, 2
      %v1116 = vadd.f32 %v1114, %v1115
      %v1117 = vrot.slane %v1116, 1
      %v1118 = vadd.f32 %v1116, %v1117
      %v1119 = vrot.slane %v1078, 4
      %v1120 = vadd.f32 %v1078, %v1119
      %v1121 = vrot.slane %v1120, 2
      %v1122 = vadd.f32 %v1120, %v1121
      %v1123 = vrot.slane %v1122, 1
      %v1124 = vadd.f32 %v1122, %v1123
      %v1125 = vrot.slane %v1079, 4
      %v1126 = vadd.f32 %v1079, %v1125
      %v1127 = vrot.slane %v1126, 2
      %v1128 = vadd.f32 %v1126, %v1127
      %v1129 = vrot.slane %v1128, 1
      %v1130 = vadd.f32 %v1128, %v1129
      %v1131 = vrot.slane %v1080, 4
      %v1132 = vadd.f32 %v1080, %v1131
      %v1133 = vrot.slane %v1132, 2
      %v1134 = vadd.f32 %v1132, %v1133
      %v1135 = vrot.slane %v1134, 1
      %v1136 = vadd.f32 %v1134, %v1135
      %v1137 = vrot.slane %v1081, 4
      %v1138 = vadd.f32 %v1081, %v1137
      %v1139 = vrot.slane %v1138, 2
      %v1140 = vadd.f32 %v1138, %v1139
      %v1141 = vrot.slane %v1140, 1
      %v1142 = vadd.f32 %v1140, %v1141
      %v1143 = vrot.slane %v1082, 4
      %v1144 = vadd.f32 %v1082, %v1143
      %v1145 = vrot.slane %v1144, 2
      %v1146 = vadd.f32 %v1144, %v1145
      %v1147 = vrot.slane %v1146, 1
      %v1148 = vadd.f32 %v1146, %v1147
      %v1149 = vrot.slane %v1083, 4
      %v1150 = vadd.f32 %v1083, %v1149
      %v1151 = vrot.slane %v1150, 2
      %v1152 = vadd.f32 %v1150, %v1151
      %v1153 = vrot.slane %v1152, 1
      %v1154 = vadd.f32 %v1152, %v1153
      %v1155 = vrot.slane %v1084, 4
      %v1156 = vadd.f32 %v1084, %v1155
      %v1157 = vrot.slane %v1156, 2
      %v1158 = vadd.f32 %v1156, %v1157
      %v1159 = vrot.slane %v1158, 1
      %v1160 = vadd.f32 %v1158, %v1159
      %v1161 = vrot.slane %v1085, 4
      %v1162 = vadd.f32 %v1085, %v1161
      %v1163 = vrot.slane %v1162, 2
      %v1164 = vadd.f32 %v1162, %v1163
      %v1165 = vrot.slane %v1164, 1
      %v1166 = vadd.f32 %v1164, %v1165
      %v1167 = vrot.slane %v1086, 4
      %v1168 = vadd.f32 %v1086, %v1167
      %v1169 = vrot.slane %v1168, 2
      %v1170 = vadd.f32 %v1168, %v1169
      %v1171 = vrot.slane %v1170, 1
      %v1172 = vadd.f32 %v1170, %v1171
      %v1173 = vrot.slane %v1087, 4
      %v1174 = vadd.f32 %v1087, %v1173
      %v1175 = vrot.slane %v1174, 2
      %v1176 = vadd.f32 %v1174, %v1175
      %v1177 = vrot.slane %v1176, 1
      %v1178 = vadd.f32 %v1176, %v1177
      %v1179 = vrot.slane %v1088, 4
      %v1180 = vadd.f32 %v1088, %v1179
      %v1181 = vrot.slane %v1180, 2
      %v1182 = vadd.f32 %v1180, %v1181
      %v1183 = vrot.slane %v1182, 1
      %v1184 = vadd.f32 %v1182, %v1183
      %v1201 = vsel %vm505, %v1100, %v1094
      %v1202 = vsel %vm507, %v1106, %v1201
      %v1203 = vsel %vm509, %v1112, %v1202
      %v1204 = vsel %vm511, %v1118, %v1203
      %v1205 = vsel %vm513, %v1124, %v1204
      %v1206 = vsel %vm515, %v1130, %v1205
      %v1207 = vsel %vm517, %v1136, %v1206
      %v1208 = vsel %vm505, %v1148, %v1142
      %v1209 = vsel %vm507, %v1154, %v1208
      %v1210 = vsel %vm509, %v1160, %v1209
      %v1211 = vsel %vm511, %v1166, %v1210
      %v1212 = vsel %vm513, %v1172, %v1211
      %v1213 = vsel %vm515, %v1178, %v1212
      %v1214 = vsel %vm517, %v1184, %v1213
      %v1217 = vld [vmem:[%s8] sm:$0x3f]
      %v1218 = vld [vmem:[#allocation16] sm:$0xff]
      %v1219 = vld [vmem:[#allocation16 + $0x8] sm:$0xff]
      %v1220 = vld [vmem:[#allocation16 + $0x10] sm:$0xff]
      %v1221 = vld [vmem:[#allocation16 + $0x18] sm:$0xff]
      %v1222 = vld [vmem:[#allocation16 + $0x20] sm:$0xff]
      %v1223 = vld [vmem:[#allocation16 + $0x28] sm:$0xff]
      %v1224 = vld [vmem:[#allocation16 + $0x30] sm:$0xff]
      %v1225 = vld [vmem:[#allocation16 + $0x38] sm:$0xff]
      %v1226 = vld [vmem:[#allocation16 + $0x40] sm:$0xff]
      %v1227 = vld [vmem:[#allocation16 + $0x48] sm:$0xff]
      %v1228 = vld [vmem:[#allocation16 + $0x50] sm:$0xff]
      %v1229 = vld [vmem:[#allocation16 + $0x58] sm:$0xff]
      %v1230 = vld [vmem:[#allocation16 + $0x60] sm:$0xff]
      %v1231 = vld [vmem:[#allocation16 + $0x68] sm:$0xff]
      %v1232 = vld [vmem:[#allocation16 + $0x70] sm:$0xff]
      %v1233 = vld [vmem:[#allocation16 + $0x78] sm:$0xff]
      %v1234 = vld [vmem:[#allocation16 + $0x80] sm:$0xff]
      %v1235 = vld [vmem:[#allocation16 + $0x88] sm:$0xff]
      %v1236 = vld [vmem:[#allocation16 + $0x90] sm:$0xff]
      %v1237 = vld [vmem:[#allocation16 + $0x98] sm:$0xff]
      %v1238 = vld [vmem:[#allocation16 + $0xa0] sm:$0xff]
      %v1239 = vld [vmem:[#allocation16 + $0xa8] sm:$0xff]
      %v1240 = vld [vmem:[#allocation16 + $0xb0] sm:$0xff]
      %v1241 = vld [vmem:[#allocation16 + $0xb8] sm:$0xff]
      %v1242 = vld [vmem:[#allocation16 + $0xc0] sm:$0xff]
      %v1243 = vld [vmem:[#allocation16 + $0xc8] sm:$0xff]
      %v1244 = vld [vmem:[#allocation16 + $0xd0] sm:$0xff]
      %v1245 = vld [vmem:[#allocation16 + $0xd8] sm:$0xff]
      %v1246 = vld [vmem:[#allocation16 + $0xe0] sm:$0xff]
      %v1247 = vld [vmem:[#allocation16 + $0xe8] sm:$0xff]
      %v1248 = vld [vmem:[#allocation16 + $0xf0] sm:$0xff]
      %v1249 = vld [vmem:[#allocation16 + $0xf8] sm:$0xff]
      %v1250 = vld [vmem:[#allocation16 + $0x100] sm:$0xff]
      %v1251 = vld [vmem:[#allocation16 + $0x108] sm:$0xff]
      %v1252 = vld [vmem:[#allocation16 + $0x110] sm:$0xff]
      %v1253 = vld [vmem:[#allocation16 + $0x118] sm:$0xff]
      %v1254 = vld [vmem:[#allocation16 + $0x120] sm:$0xff]
      %v1255 = vld [vmem:[#allocation16 + $0x128] sm:$0xff]
      %v1256 = vld [vmem:[#allocation16 + $0x130] sm:$0xff]
      %v1257 = vld [vmem:[#allocation16 + $0x138] sm:$0xff]
      %v1258 = vld [vmem:[#allocation16 + $0x140] sm:$0xff]
      %v1259 = vld [vmem:[#allocation16 + $0x148] sm:$0xff]
      %v1260 = vld [vmem:[#allocation16 + $0x150] sm:$0xff]
      %v1261 = vld [vmem:[#allocation16 + $0x158] sm:$0xff]
      %v1262 = vld [vmem:[#allocation16 + $0x160] sm:$0xff]
      %v1263 = vld [vmem:[#allocation16 + $0x168] sm:$0xff]
      %v1264 = vld [vmem:[#allocation16 + $0x170] sm:$0xff]
      %v1265 = vld [vmem:[#allocation16 + $0x178] sm:$0xff]
      %v1266 = vld [vmem:[#allocation16 + $0x180] sm:$0xff]
      %v1267 = vld [vmem:[#allocation16 + $0x188] sm:$0xff]
      %v1268 = vld [vmem:[#allocation16 + $0x190] sm:$0xff]
      %v1269 = vld [vmem:[#allocation16 + $0x198] sm:$0xff]
      %v1270 = vld [vmem:[#allocation16 + $0x1a0] sm:$0xff]
      %v1271 = vld [vmem:[#allocation16 + $0x1a8] sm:$0xff]
      %v1272 = vld [vmem:[#allocation16 + $0x1b0] sm:$0xff]
      %v1273 = vld [vmem:[#allocation16 + $0x1b8] sm:$0xff]
      %v1274 = vld [vmem:[#allocation16 + $0x1c0] sm:$0xff]
      %v1275 = vld [vmem:[#allocation16 + $0x1c8] sm:$0xff]
      %v1276 = vld [vmem:[#allocation16 + $0x1d0] sm:$0xff]
      %v1277 = vld [vmem:[#allocation16 + $0x1d8] sm:$0xff]
      %v1278 = vld [vmem:[#allocation16 + $0x1e0] sm:$0xff]
      %v1279 = vld [vmem:[#allocation16 + $0x1e8] sm:$0xff]
      %v1280 = vld [vmem:[#allocation16 + $0x1f0] sm:$0xff]
      %v1281 = vld [vmem:[#allocation16 + $0x1f8] sm:$0xff]
      %v1282 = vld [vmem:[#allocation16 + $0x200] sm:$0xff]
      %v1283 = vld [vmem:[#allocation16 + $0x208] sm:$0xff]
      %v1284 = vld [vmem:[#allocation16 + $0x210] sm:$0xff]
      %v1285 = vld [vmem:[#allocation16 + $0x218] sm:$0xff]
      %v1286 = vld [vmem:[#allocation16 + $0x220] sm:$0xff]
      %v1287 = vld [vmem:[#allocation16 + $0x228] sm:$0xff]
      %v1288 = vld [vmem:[#allocation16 + $0x230] sm:$0xff]
      %v1289 = vld [vmem:[#allocation16 + $0x238] sm:$0xff]
      %v1290 = vld [vmem:[#allocation16 + $0x240] sm:$0xff]
      %v1291 = vld [vmem:[#allocation16 + $0x248] sm:$0xff]
      %v1292 = vld [vmem:[#allocation16 + $0x250] sm:$0xff]
      %v1293 = vld [vmem:[#allocation16 + $0x258] sm:$0xff]
      %v1294 = vld [vmem:[#allocation16 + $0x260] sm:$0xff]
      %v1295 = vld [vmem:[#allocation16 + $0x268] sm:$0xff]
      %v1296 = vld [vmem:[#allocation16 + $0x270] sm:$0xff]
      %v1297 = vld [vmem:[#allocation16 + $0x278] sm:$0xff]
      %v1298 = vld [vmem:[#allocation16 + $0x280] sm:$0xff]
      %v1299 = vld [vmem:[#allocation16 + $0x288] sm:$0xff]
      %v1300 = vld [vmem:[#allocation16 + $0x290] sm:$0xff]
      %v1301 = vld [vmem:[#allocation16 + $0x298] sm:$0xff]
      %v1302 = vld [vmem:[#allocation16 + $0x2a0] sm:$0xff]
      %v1303 = vld [vmem:[#allocation16 + $0x2a8] sm:$0xff]
      %v1304 = vld [vmem:[#allocation16 + $0x2b0] sm:$0xff]
      %v1305 = vld [vmem:[#allocation16 + $0x2b8] sm:$0xff]
      %v1306 = vld [vmem:[#allocation16 + $0x2c0] sm:$0xff]
      %v1307 = vld [vmem:[#allocation16 + $0x2c8] sm:$0xff]
      %v1308 = vld [vmem:[#allocation16 + $0x2d0] sm:$0xff]
      %v1309 = vld [vmem:[#allocation16 + $0x2d8] sm:$0xff]
      %v1310 = vld [vmem:[#allocation16 + $0x2e0] sm:$0xff]
      %v1311 = vld [vmem:[#allocation16 + $0x2e8] sm:$0xff]
      %v1312 = vld [vmem:[#allocation16 + $0x2f0] sm:$0xff]
      %v1313 = vld [vmem:[#allocation16 + $0x2f8] sm:$0xff]
      %v1315 = vperm.slane %v1217, 0
      %v1316 = vperm.slane %v1217, 2
      %v1317 = vperm.slane %v1217, 4
      %v1321 = vperm.slane %v1315, 0
      %v1322 = vperm.slane %v1316, 0
      %v1323 = vperm.slane %v1317, 0
      %1324 = vmatpush.msra.mxu0 %v1263
      %1325 = vmatpush.msra.mxu0 %v1260
      %1326 = vmatpush.msra.mxu0 %v1257
      %1327 = vmatpush.msra.mxu0 %v1254
      %1328 = vmatpush.msra.mxu0 %v1251
      %1329 = vmatpush.msra.mxu0 %v1248
      %1330 = vmatpush.msra.mxu0 %v1245
      %1331 = vmatpush.msra.mxu0 %v1242
      %1332 = vmatpush.msra.mxu0 %v1239
      %1333 = vmatpush.msra.mxu0 %v1236
      %1334 = vmatpush.msra.mxu0 %v1233
      %1335 = vmatpush.msra.mxu0 %v1230
      %1336 = vmatpush.msra.mxu0 %v1227
      %1337 = vmatpush.msra.mxu0 %v1224
      %1338 = vmatpush.msra.mxu0 %v1221
      %1339 = vmatpush.msra.mxu0 %v1218
      %1340 = vmatmul.f32.gmra.mxu0 %v184
      %v1341 = vpop.f32.mrf.mxu0
      %v1342 = vadd.f32 %v1321, %v1341
      %1343 = vmatmul.f32.gmra.mxu0 %v185
      %v1344 = vpop.f32.mrf.mxu0
      %v1345 = vadd.f32 %v1321, %v1344
      %1346 = vdwg.mxu0
      %1347 = vmatpush.msra.mxu0 %v1311
      %1348 = vmatpush.msra.mxu0 %v1308
      %1349 = vmatpush.msra.mxu0 %v1305
      %1350 = vmatpush.msra.mxu0 %v1302
      %1351 = vmatpush.msra.mxu0 %v1299
      %1352 = vmatpush.msra.mxu0 %v1296
      %1353 = vmatpush.msra.mxu0 %v1293
      %1354 = vmatpush.msra.mxu0 %v1290
      %1355 = vmatpush.msra.mxu0 %v1287
      %1356 = vmatpush.msra.mxu0 %v1284
      %1357 = vmatpush.msra.mxu0 %v1281
      %1358 = vmatpush.msra.mxu0 %v1278
      %1359 = vmatpush.msra.mxu0 %v1275
      %1360 = vmatpush.msra.mxu0 %v1272
      %1361 = vmatpush.msra.mxu0 %v1269
      %1362 = vmatpush.msra.mxu0 %v1266
      %1363 = vmatmul.f32.gmra.mxu0 %v1207
      %v1364 = vpop.f32.mrf.mxu0
      %v1365 = vadd.f32 %v1342, %v1364
      %1366 = vmatmul.f32.gmra.mxu0 %v1214
      %v1367 = vpop.f32.mrf.mxu0
      %v1368 = vadd.f32 %v1345, %v1367
      %1369 = vdwg.mxu0
      %1370 = vmatpush.msra.mxu0 %v1264
      %1371 = vmatpush.msra.mxu0 %v1261
      %1372 = vmatpush.msra.mxu0 %v1258
      %1373 = vmatpush.msra.mxu0 %v1255
      %1374 = vmatpush.msra.mxu0 %v1252
      %1375 = vmatpush.msra.mxu0 %v1249
      %1376 = vmatpush.msra.mxu0 %v1246
      %1377 = vmatpush.msra.mxu0 %v1243
      %1378 = vmatpush.msra.mxu0 %v1240
      %1379 = vmatpush.msra.mxu0 %v1237
      %1380 = vmatpush.msra.mxu0 %v1234
      %1381 = vmatpush.msra.mxu0 %v1231
      %1382 = vmatpush.msra.mxu0 %v1228
      %1383 = vmatpush.msra.mxu0 %v1225
      %1384 = vmatpush.msra.mxu0 %v1222
      %1385 = vmatpush.msra.mxu0 %v1219
      %1386 = vmatmul.f32.gmra.mxu0 %v184
      %v1387 = vpop.f32.mrf.mxu0
      %v1388 = vadd.f32 %v1322, %v1387
      %1389 = vmatmul.f32.gmra.mxu0 %v185
      %v1390 = vpop.f32.mrf.mxu0
      %v1391 = vadd.f32 %v1322, %v1390
      %1392 = vdwg.mxu0
      %1393 = vmatpush.msra.mxu0 %v1312
      %1394 = vmatpush.msra.mxu0 %v1309
      %1395 = vmatpush.msra.mxu0 %v1306
      %1396 = vmatpush.msra.mxu0 %v1303
      %1397 = vmatpush.msra.mxu0 %v1300
      %1398 = vmatpush.msra.mxu0 %v1297
      %1399 = vmatpush.msra.mxu0 %v1294
      %1400 = vmatpush.msra.mxu0 %v1291
      %1401 = vmatpush.msra.mxu0 %v1288
      %1402 = vmatpush.msra.mxu0 %v1285
      %1403 = vmatpush.msra.mxu0 %v1282
      %1404 = vmatpush.msra.mxu0 %v1279
      %1405 = vmatpush.msra.mxu0 %v1276
      %1406 = vmatpush.msra.mxu0 %v1273
      %1407 = vmatpush.msra.mxu0 %v1270
      %1408 = vmatpush.msra.mxu0 %v1267
      %1409 = vmatmul.f32.gmra.mxu0 %v1207
      %v1410 = vpop.f32.mrf.mxu0
      %v1411 = vadd.f32 %v1388, %v1410
      %1412 = vmatmul.f32.gmra.mxu0 %v1214
      %v1413 = vpop.f32.mrf.mxu0
      %v1414 = vadd.f32 %v1391, %v1413
      %1415 = vdwg.mxu0
      %1416 = vmatpush.msra.mxu0 %v1265
      %1417 = vmatpush.msra.mxu0 %v1262
      %1418 = vmatpush.msra.mxu0 %v1259
      %1419 = vmatpush.msra.mxu0 %v1256
      %1420 = vmatpush.msra.mxu0 %v1253
      %1421 = vmatpush.msra.mxu0 %v1250
      %1422 = vmatpush.msra.mxu0 %v1247
      %1423 = vmatpush.msra.mxu0 %v1244
      %1424 = vmatpush.msra.mxu0 %v1241
      %1425 = vmatpush.msra.mxu0 %v1238
      %1426 = vmatpush.msra.mxu0 %v1235
      %1427 = vmatpush.msra.mxu0 %v1232
      %1428 = vmatpush.msra.mxu0 %v1229
      %1429 = vmatpush.msra.mxu0 %v1226
      %1430 = vmatpush.msra.mxu0 %v1223
      %1431 = vmatpush.msra.mxu0 %v1220
      %1432 = vmatmul.f32.gmra.mxu0 %v184
      %v1433 = vpop.f32.mrf.mxu0
      %v1434 = vadd.f32 %v1323, %v1433
      %1435 = vmatmul.f32.gmra.mxu0 %v185
      %v1436 = vpop.f32.mrf.mxu0
      %v1437 = vadd.f32 %v1323, %v1436
      %1438 = vdwg.mxu0
      %1439 = vmatpush.msra.mxu0 %v1313
      %1440 = vmatpush.msra.mxu0 %v1310
      %1441 = vmatpush.msra.mxu0 %v1307
      %1442 = vmatpush.msra.mxu0 %v1304
      %1443 = vmatpush.msra.mxu0 %v1301
      %1444 = vmatpush.msra.mxu0 %v1298
      %1445 = vmatpush.msra.mxu0 %v1295
      %1446 = vmatpush.msra.mxu0 %v1292
      %1447 = vmatpush.msra.mxu0 %v1289
      %1448 = vmatpush.msra.mxu0 %v1286
      %1449 = vmatpush.msra.mxu0 %v1283
      %1450 = vmatpush.msra.mxu0 %v1280
      %1451 = vmatpush.msra.mxu0 %v1277
      %1452 = vmatpush.msra.mxu0 %v1274
      %1453 = vmatpush.msra.mxu0 %v1271
      %1454 = vmatpush.msra.mxu0 %v1268
      %1455 = vmatmul.f32.gmra.mxu0 %v1207
      %v1456 = vpop.f32.mrf.mxu0
      %v1457 = vadd.f32 %v1434, %v1456
      %1458 = vmatmul.f32.gmra.mxu0 %v1214
      %v1459 = vpop.f32.mrf.mxu0
      %v1460 = vadd.f32 %v1437, %v1459
      %1461 = vdwg.mxu0
      %v1462 = vld [vmem:[#allocation17] sm:$0xff]
      %v1463 = vld [vmem:[#allocation17 + $0x8] sm:$0xff]
      %v1464 = vld [vmem:[#allocation17 + $0x10] sm:$0xff]
      %v1465 = vld [vmem:[#allocation17 + $0x18] sm:$0xff]
      %v1466 = vld [vmem:[#allocation17 + $0x20] sm:$0xff]
      %v1467 = vld [vmem:[#allocation17 + $0x28] sm:$0xff]
      %v1468 = vld [vmem:[#allocation17 + $0x30] sm:$0xff]
      %v1469 = vld [vmem:[#allocation17 + $0x38] sm:$0xff]
      %v1470 = vld [vmem:[#allocation17 + $0x40] sm:$0xff]
      %v1471 = vld [vmem:[#allocation17 + $0x48] sm:$0xff]
      %v1472 = vld [vmem:[#allocation17 + $0x50] sm:$0xff]
      %v1473 = vld [vmem:[#allocation17 + $0x58] sm:$0xff]
      %v1474 = vld [vmem:[#allocation17 + $0x60] sm:$0xff]
      %v1475 = vld [vmem:[#allocation17 + $0x68] sm:$0xff]
      %v1476 = vld [vmem:[#allocation17 + $0x70] sm:$0xff]
      %v1477 = vld [vmem:[#allocation17 + $0x78] sm:$0xff]
      %v1478 = vld [vmem:[#allocation17 + $0x80] sm:$0xff]
      %v1479 = vld [vmem:[#allocation17 + $0x88] sm:$0xff]
      %v1480 = vld [vmem:[#allocation17 + $0x90] sm:$0xff]
      %v1481 = vld [vmem:[#allocation17 + $0x98] sm:$0xff]
      %v1482 = vld [vmem:[#allocation17 + $0xa0] sm:$0xff]
      %v1483 = vld [vmem:[#allocation17 + $0xa8] sm:$0xff]
      %v1484 = vld [vmem:[#allocation17 + $0xb0] sm:$0xff]
      %v1485 = vld [vmem:[#allocation17 + $0xb8] sm:$0xff]
      %v1486 = vld [vmem:[#allocation17 + $0xc0] sm:$0xff]
      %v1487 = vld [vmem:[#allocation17 + $0xc8] sm:$0xff]
      %v1488 = vld [vmem:[#allocation17 + $0xd0] sm:$0xff]
      %v1489 = vld [vmem:[#allocation17 + $0xd8] sm:$0xff]
      %v1490 = vld [vmem:[#allocation17 + $0xe0] sm:$0xff]
      %v1491 = vld [vmem:[#allocation17 + $0xe8] sm:$0xff]
      %v1492 = vld [vmem:[#allocation17 + $0xf0] sm:$0xff]
      %v1493 = vld [vmem:[#allocation17 + $0xf8] sm:$0xff]
      %v1494 = vld [vmem:[#allocation17 + $0x100] sm:$0xff]
      %v1495 = vld [vmem:[#allocation17 + $0x108] sm:$0xff]
      %v1496 = vld [vmem:[#allocation17 + $0x110] sm:$0xff]
      %v1497 = vld [vmem:[#allocation17 + $0x118] sm:$0xff]
      %v1498 = vld [vmem:[#allocation17 + $0x120] sm:$0xff]
      %v1499 = vld [vmem:[#allocation17 + $0x128] sm:$0xff]
      %v1500 = vld [vmem:[#allocation17 + $0x130] sm:$0xff]
      %v1501 = vld [vmem:[#allocation17 + $0x138] sm:$0xff]
      %v1502 = vld [vmem:[#allocation17 + $0x140] sm:$0xff]
      %v1503 = vld [vmem:[#allocation17 + $0x148] sm:$0xff]
      %v1504 = vld [vmem:[#allocation17 + $0x150] sm:$0xff]
      %v1505 = vld [vmem:[#allocation17 + $0x158] sm:$0xff]
      %v1506 = vld [vmem:[#allocation17 + $0x160] sm:$0xff]
      %v1507 = vld [vmem:[#allocation17 + $0x168] sm:$0xff]
      %v1508 = vld [vmem:[#allocation17 + $0x170] sm:$0xff]
      %v1509 = vld [vmem:[#allocation17 + $0x178] sm:$0xff]
      %v1510 = vperm.slane %v1217, 1
      %v1511 = vperm.slane %v1217, 3
      %v1512 = vperm.slane %v1217, 5
      %v1516 = vperm.slane %v1510, 1
      %v1517 = vperm.slane %v1511, 1
      %v1518 = vperm.slane %v1512, 1
      %1519 = vmatpush.msra.mxu0 %v1507
      %1520 = vmatpush.msra.mxu0 %v1504
      %1521 = vmatpush.msra.mxu0 %v1501
      %1522 = vmatpush.msra.mxu0 %v1498
      %1523 = vmatpush.msra.mxu0 %v1495
      %1524 = vmatpush.msra.mxu0 %v1492
      %1525 = vmatpush.msra.mxu0 %v1489
      %1526 = vmatpush.msra.mxu0 %v1486
      %1527 = vmatpush.msra.mxu0 %v1483
      %1528 = vmatpush.msra.mxu0 %v1480
      %1529 = vmatpush.msra.mxu0 %v1477
      %1530 = vmatpush.msra.mxu0 %v1474
      %1531 = vmatpush.msra.mxu0 %v1471
      %1532 = vmatpush.msra.mxu0 %v1468
      %1533 = vmatpush.msra.mxu0 %v1465
      %1534 = vmatpush.msra.mxu0 %v1462
      %1535 = vmatmul.f32.gmra.mxu0 %v186
      %v1536 = vpop.f32.mrf.mxu0
      %v1537 = vadd.f32 %v1516, %v1536
      %1538 = vmatmul.f32.gmra.mxu0 %v187
      %v1539 = vpop.f32.mrf.mxu0
      %v1540 = vadd.f32 %v1516, %v1539
      %1541 = vdwg.mxu0
      %1542 = vmatpush.msra.mxu0 %v1508
      %1543 = vmatpush.msra.mxu0 %v1505
      %1544 = vmatpush.msra.mxu0 %v1502
      %1545 = vmatpush.msra.mxu0 %v1499
      %1546 = vmatpush.msra.mxu0 %v1496
      %1547 = vmatpush.msra.mxu0 %v1493
      %1548 = vmatpush.msra.mxu0 %v1490
      %1549 = vmatpush.msra.mxu0 %v1487
      %1550 = vmatpush.msra.mxu0 %v1484
      %1551 = vmatpush.msra.mxu0 %v1481
      %1552 = vmatpush.msra.mxu0 %v1478
      %1553 = vmatpush.msra.mxu0 %v1475
      %1554 = vmatpush.msra.mxu0 %v1472
      %1555 = vmatpush.msra.mxu0 %v1469
      %1556 = vmatpush.msra.mxu0 %v1466
      %1557 = vmatpush.msra.mxu0 %v1463
      %1558 = vmatmul.f32.gmra.mxu0 %v186
      %v1559 = vpop.f32.mrf.mxu0
      %v1560 = vadd.f32 %v1517, %v1559
      %1561 = vmatmul.f32.gmra.mxu0 %v187
      %v1562 = vpop.f32.mrf.mxu0
      %v1563 = vadd.f32 %v1517, %v1562
      %1564 = vdwg.mxu0
      %1565 = vmatpush.msra.mxu0 %v1509
      %1566 = vmatpush.msra.mxu0 %v1506
      %1567 = vmatpush.msra.mxu0 %v1503
      %1568 = vmatpush.msra.mxu0 %v1500
      %1569 = vmatpush.msra.mxu0 %v1497
      %1570 = vmatpush.msra.mxu0 %v1494
      %1571 = vmatpush.msra.mxu0 %v1491
      %1572 = vmatpush.msra.mxu0 %v1488
      %1573 = vmatpush.msra.mxu0 %v1485
      %1574 = vmatpush.msra.mxu0 %v1482
      %1575 = vmatpush.msra.mxu0 %v1479
      %1576 = vmatpush.msra.mxu0 %v1476
      %1577 = vmatpush.msra.mxu0 %v1473
      %1578 = vmatpush.msra.mxu0 %v1470
      %1579 = vmatpush.msra.mxu0 %v1467
      %1580 = vmatpush.msra.mxu0 %v1464
      %1581 = vmatmul.f32.gmra.mxu0 %v186
      %v1582 = vpop.f32.mrf.mxu0
      %v1583 = vadd.f32 %v1518, %v1582
      %1584 = vmatmul.f32.gmra.mxu0 %v187
      %v1585 = vpop.f32.mrf.mxu0
      %v1586 = vadd.f32 %v1518, %v1585
      %1587 = vdwg.mxu0
      %v1588 = vadd.f32 %v1365, %v1537
      %v1589 = vadd.f32 %v1368, %v1540
      %v1590 = vxor.u32 %v1588, 2147483648
      %v1591 = vxor.u32 %v1589, 2147483648
      %v1592 = vmul.f32 %v1590, 1.442695
      %v1593 = vpow.pop %v1592
      %v1594 = vmul.f32 %v1591, 1.442695
      %v1595 = vpow.pop %v1594
      %v1596 = vadd.f32 %v1593, 1.0
      %v1597 = vadd.f32 %v1595, 1.0
      %v1598 = vrcp.pop %v1596
      %v1599 = vmul.f32 %v1596, %v1598
      %v1600 = vsub.f32 1.0, %v1599
      %v1601 = vmul.f32 %v1598, %v1600
      %v1602 = vadd.f32 %v1598, %v1601
      %vm1603 = vweird.f32 %v1596
      %vm1604 = vweird.f32 %v1598
      %vm1605 = vmor %vm1603, %vm1604
      %v1606 = vsel %vm1605, %v1598, %v1602
      %v1607 = vand.u32 2147483647, %v1596
      %vm1608 = vcmp.eq.f32.partialorder %v1607, 8.507059e+37
      %v1609 = vand.u32 %v1596, 2147483648
      %v1610 = vor.u32 1.1754944e-38, %v1609
      %v1611 = vsel %vm1608, %v1610, %v1606
      %v1612 = vmul.f32 1.0, %v1611
      %v1613 = vrcp.pop %v1597
      %v1614 = vmul.f32 %v1597, %v1613
      %v1615 = vsub.f32 1.0, %v1614
      %v1616 = vmul.f32 %v1613, %v1615
      %v1617 = vadd.f32 %v1613, %v1616
      %vm1618 = vweird.f32 %v1597
      %vm1619 = vweird.f32 %v1613
      %vm1620 = vmor %vm1618, %vm1619
      %v1621 = vsel %vm1620, %v1613, %v1617
      %v1622 = vand.u32 2147483647, %v1597
      %vm1623 = vcmp.eq.f32.partialorder %v1622, 8.507059e+37
      %v1624 = vand.u32 %v1597, 2147483648
      %v1625 = vor.u32 1.1754944e-38, %v1624
      %v1626 = vsel %vm1623, %v1625, %v1621
      %v1627 = vmul.f32 1.0, %v1626
      %v1628 = vadd.f32 %v1411, %v1560
      %v1629 = vadd.f32 %v1414, %v1563
      %v1630 = vxor.u32 %v1628, 2147483648
      %v1631 = vxor.u32 %v1629, 2147483648
      %v1632 = vmul.f32 %v1630, 1.442695
      %v1633 = vpow.pop %v1632
      %v1634 = vmul.f32 %v1631, 1.442695
      %v1635 = vpow.pop %v1634
      %v1636 = vadd.f32 %v1633, 1.0
      %v1637 = vadd.f32 %v1635, 1.0
      %v1638 = vrcp.pop %v1636
      %v1639 = vmul.f32 %v1636, %v1638
      %v1640 = vsub.f32 1.0, %v1639
      %v1641 = vmul.f32 %v1638, %v1640
      %v1642 = vadd.f32 %v1638, %v1641
      %vm1643 = vweird.f32 %v1636
      %vm1644 = vweird.f32 %v1638
      %vm1645 = vmor %vm1643, %vm1644
      %v1646 = vsel %vm1645, %v1638, %v1642
      %v1647 = vand.u32 2147483647, %v1636
      %vm1648 = vcmp.eq.f32.partialorder %v1647, 8.507059e+37
      %v1649 = vand.u32 %v1636, 2147483648
      %v1650 = vor.u32 1.1754944e-38, %v1649
      %v1651 = vsel %vm1648, %v1650, %v1646
      %v1652 = vmul.f32 1.0, %v1651
      %v1653 = vrcp.pop %v1637
      %v1654 = vmul.f32 %v1637, %v1653
      %v1655 = vsub.f32 1.0, %v1654
      %v1656 = vmul.f32 %v1653, %v1655
      %v1657 = vadd.f32 %v1653, %v1656
      %vm1658 = vweird.f32 %v1637
      %vm1659 = vweird.f32 %v1653
      %vm1660 = vmor %vm1658, %vm1659
      %v1661 = vsel %vm1660, %v1653, %v1657
      %v1662 = vand.u32 2147483647, %v1637
      %vm1663 = vcmp.eq.f32.partialorder %v1662, 8.507059e+37
      %v1664 = vand.u32 %v1637, 2147483648
      %v1665 = vor.u32 1.1754944e-38, %v1664
      %v1666 = vsel %vm1663, %v1665, %v1661
      %v1667 = vmul.f32 1.0, %v1666
      %v1668 = vmul.f32 %v1612, %v1583
      %v1669 = vmul.f32 %v1627, %v1586
      %v1670 = vadd.f32 %v1457, %v1668
      %v1671 = vadd.f32 %v1460, %v1669
      %v1672 = vtanh.pop %v1670
      %v1673 = vtanh.pop %v1671
      %v1674 = vsub.f32 1.0, %v1652
      %v1675 = vsub.f32 1.0, %v1667
      %v1676 = vmul.f32 %v1674, %v1672
      %v1677 = vmul.f32 %v1675, %v1673
      %v1678 = vmul.f32 %v1652, %v186
      %v1679 = vmul.f32 %v1667, %v187
      %v1680 = vadd.f32 %v1676, %v1678
      %v1681 = vadd.f32 %v1677, %v1679
      %1682 = vst [vmem:[#allocation21] sm:$0xff] %v1680
      %1683 = vst [vmem:[#allocation21 + $0x8] sm:$0xff] %v1681
      %1684 = vst [vmem:[#allocation2] sm:$0xff] %v1680
      %1685 = vst [vmem:[#allocation2 + $0x8] sm:$0xff] %v1207
      %1686 = vst [vmem:[#allocation2 + $0x10] sm:$0xff] %v1681
      %1687 = vst [vmem:[#allocation2 + $0x18] sm:$0xff] %v1214
      %vm1688 = vcmask 7168
      %1689 = vst.msk [vmem:[#allocation3] sm:$0xff] %vm1688, -1e+30
      %1690 = vst.msk [vmem:[#allocation3 + $0x8] sm:$0xff] %vm1688, -1e+30
      %1691 = vst.msk [vmem:[#allocation4] sm:$0xff] %vm1688, 0.0
      %1692 = vst.msk [vmem:[#allocation4 + $0x8] sm:$0xff] %vm1688, 0.0
    $region85: #{tpu_custom_call.1} parent=1 // pred_fallthru
      _
    %v1693 = vld [vmem:[#allocation2] sm:$0xff]
    %v1694 = vld [vmem:[#allocation2 + $0x8] sm:$0xff]
    %v1695 = vld [vmem:[#allocation2 + $0x10] sm:$0xff]
    %v1696 = vld [vmem:[#allocation2 + $0x18] sm:$0xff]
    %v1697 = vld [vmem:[#allocation19] sm:$0xff]
    %v1698 = vld [vmem:[#allocation19 + $0x8] sm:$0xff]
    %v1699 = vld [vmem:[#allocation19 + $0x10] sm:$0xff]
    %v1700 = vld [vmem:[#allocation19 + $0x18] sm:$0xff]
    %v1701 = vld [vmem:[#allocation19 + $0x20] sm:$0xff]
    %v1702 = vld [vmem:[#allocation19 + $0x28] sm:$0xff]
    %v1703 = vld [vmem:[#allocation19 + $0x30] sm:$0xff]
    %v1704 = vld [vmem:[#allocation19 + $0x38] sm:$0xff]
    %v1705 = vld [vmem:[#allocation19 + $0x40] sm:$0xff]
    %v1706 = vld [vmem:[#allocation19 + $0x48] sm:$0xff]
    %v1707 = vld [vmem:[#allocation19 + $0x50] sm:$0xff]
    %v1708 = vld [vmem:[#allocation19 + $0x58] sm:$0xff]
    %v1709 = vld [vmem:[#allocation19 + $0x60] sm:$0xff]
    %v1710 = vld [vmem:[#allocation19 + $0x68] sm:$0xff]
    %v1711 = vld [vmem:[#allocation19 + $0x70] sm:$0xff]
    %v1712 = vld [vmem:[#allocation19 + $0x78] sm:$0xff]
    %v1713 = vld [vmem:[#allocation19 + $0x80] sm:$0xff]
    %v1714 = vld [vmem:[#allocation19 + $0x88] sm:$0xff]
    %v1715 = vld [vmem:[#allocation19 + $0x90] sm:$0xff]
    %v1716 = vld [vmem:[#allocation19 + $0x98] sm:$0xff]
    %v1717 = vld [vmem:[#allocation19 + $0xa0] sm:$0xff]
    %v1718 = vld [vmem:[#allocation19 + $0xa8] sm:$0xff]
    %v1719 = vld [vmem:[#allocation19 + $0xb0] sm:$0xff]
    %v1720 = vld [vmem:[#allocation19 + $0xb8] sm:$0xff]
    %v1721 = vld [vmem:[#allocation19 + $0xc0] sm:$0xff]
    %v1722 = vld [vmem:[#allocation19 + $0xc8] sm:$0xff]
    %v1723 = vld [vmem:[#allocation19 + $0xd0] sm:$0xff]
    %v1724 = vld [vmem:[#allocation19 + $0xd8] sm:$0xff]
    %v1725 = vld [vmem:[#allocation19 + $0xe0] sm:$0xff]
    %v1726 = vld [vmem:[#allocation19 + $0xe8] sm:$0xff]
    %v1727 = vld [vmem:[#allocation19 + $0xf0] sm:$0xff]
    %v1728 = vld [vmem:[#allocation19 + $0xf8] sm:$0xff]
    %v1729 = vld [vmem:[%s10] sm:$0x1]
    %v1731 = vperm.slane %v1729, 0
    %1733 = vmatpush.msra.mxu0 %v1712
    %1734 = vmatpush.msra.mxu0 %v1711
    %1735 = vmatpush.msra.mxu0 %v1710
    %1736 = vmatpush.msra.mxu0 %v1709
    %1737 = vmatpush.msra.mxu0 %v1708
    %1738 = vmatpush.msra.mxu0 %v1707
    %1739 = vmatpush.msra.mxu0 %v1706
    %1740 = vmatpush.msra.mxu0 %v1705
    %1741 = vmatpush.msra.mxu0 %v1704
    %1742 = vmatpush.msra.mxu0 %v1703
    %1743 = vmatpush.msra.mxu0 %v1702
    %1744 = vmatpush.msra.mxu0 %v1701
    %1745 = vmatpush.msra.mxu0 %v1700
    %1746 = vmatpush.msra.mxu0 %v1699
    %1747 = vmatpush.msra.mxu0 %v1698
    %1748 = vmatpush.msra.mxu0 %v1697
    %1749 = vmatmul.f32.gmra.mxu0 %v1693
    %v1750 = vpop.f32.mrf.mxu0
    %v1751 = vadd.f32 %v1731, %v1750
    %1752 = vmatmul.f32.gmra.mxu0 %v1695
    %v1753 = vpop.f32.mrf.mxu0
    %v1754 = vadd.f32 %v1731, %v1753
    %1755 = vdwg.mxu0
    %1756 = vmatpush.msra.mxu0 %v1728
    %1757 = vmatpush.msra.mxu0 %v1727
    %1758 = vmatpush.msra.mxu0 %v1726
    %1759 = vmatpush.msra.mxu0 %v1725
    %1760 = vmatpush.msra.mxu0 %v1724
    %1761 = vmatpush.msra.mxu0 %v1723
    %1762 = vmatpush.msra.mxu0 %v1722
    %1763 = vmatpush.msra.mxu0 %v1721
    %1764 = vmatpush.msra.mxu0 %v1720
    %1765 = vmatpush.msra.mxu0 %v1719
    %1766 = vmatpush.msra.mxu0 %v1718
    %1767 = vmatpush.msra.mxu0 %v1717
    %1768 = vmatpush.msra.mxu0 %v1716
    %1769 = vmatpush.msra.mxu0 %v1715
    %1770 = vmatpush.msra.mxu0 %v1714
    %1771 = vmatpush.msra.mxu0 %v1713
    %1772 = vmatmul.f32.gmra.mxu0 %v1694
    %v1773 = vpop.f32.mrf.mxu0
    %v1774 = vadd.f32 %v1751, %v1773
    %1775 = vmatmul.f32.gmra.mxu0 %v1696
    %v1776 = vpop.f32.mrf.mxu0
    %v1777 = vadd.f32 %v1754, %v1776
    %1778 = vdwg.mxu0
    %v1779 = vld [vmem:[#allocation3] sm:$0xff]
    %v1780 = vld [vmem:[#allocation3 + $0x8] sm:$0xff]
    %1781 = vmax.xlane.f32.xlu0 %v1774
    %v1782 = vpop.xlane.xlu0 %1781
    %1783 = vmax.xlane.f32.xlu0 %v1777
    %v1784 = vpop.xlane.xlu0 %1783
    %v1785 = vmax.f32 %v1779, %v1782
    %v1786 = vmax.f32 %v1780, %v1784
    %v1787 = vld [vmem:[#allocation4] sm:$0xff]
    %v1788 = vld [vmem:[#allocation4 + $0x8] sm:$0xff]
    %v1789 = vsub.f32 %v1779, %v1785
    %v1790 = vsub.f32 %v1780, %v1786
    %v1791 = vmul.f32 %v1789, 1.442695
    %v1792 = vpow.pop %v1791
    %v1793 = vmul.f32 %v1790, 1.442695
    %v1794 = vpow.pop %v1793
    %v1795 = vmul.f32 %v1787, %v1792
    %v1796 = vmul.f32 %v1788, %v1794
    %1798 = vset.pattern.permute.xlu0 0
    %1799 = vperm.xlu0 %1798, %v1785
    %v1800 = vpop.permute.xlu0 %1799
    %1803 = vset.pattern.permute.xlu0 0
    %1804 = vperm.xlu0 %1803, %v1786
    %v1805 = vpop.permute.xlu0 %1804
    %v1807 = vsub.f32 %v1774, %v1800
    %v1808 = vsub.f32 %v1777, %v1805
    %v1809 = vmul.f32 %v1807, 1.442695
    %v1810 = vpow.pop %v1809
    %v1811 = vmul.f32 %v1808, 1.442695
    %v1812 = vpow.pop %v1811
    %1813 = vadd.xlane.f32.xlu0 %v1810
    %v1814 = vpop.xlane.xlu0 %1813
    %1815 = vadd.xlane.f32.xlu0 %v1812
    %v1816 = vpop.xlane.xlu0 %1815
    %v1817 = vadd.f32 %v1795, %v1814
    %v1818 = vadd.f32 %v1796, %v1816
    %vm1819 = vcmask 7168
    %1820 = vst.msk [vmem:[#allocation4] sm:$0xff] %vm1819, %v1817
    %1821 = vst.msk [vmem:[#allocation4 + $0x8] sm:$0xff] %vm1819, %v1818
    %1822 = vst.msk [vmem:[#allocation3] sm:$0xff] %vm1819, %v1785
    %1823 = vst.msk [vmem:[#allocation3 + $0x8] sm:$0xff] %vm1819, %v1786
    %v1826 = vrot.slane %v1774, 1
    %v1827 = vrot.slane %v1774, 2
    %v1828 = vrot.slane %v1774, 3
    %v1829 = vrot.slane %v1774, 4
    %v1830 = vrot.slane %v1774, 5
    %v1831 = vrot.slane %v1774, 6
    %v1832 = vrot.slane %v1774, 7
    %v1833 = vrot.slane %v1777, 1
    %v1834 = vrot.slane %v1777, 2
    %v1835 = vrot.slane %v1777, 3
    %v1836 = vrot.slane %v1777, 4
    %v1837 = vrot.slane %v1777, 5
    %v1838 = vrot.slane %v1777, 6
    %v1839 = vrot.slane %v1777, 7
    %1854 = vst [vmem:[#allocation20] sm:$0x1] %v1774
    %1855 = vst [vmem:[#allocation20 + $0x1] sm:$0x1] %v1826
    %1856 = vst [vmem:[#allocation20 + $0x2] sm:$0x1] %v1827
    %1857 = vst [vmem:[#allocation20 + $0x3] sm:$0x1] %v1828
    %1858 = vst [vmem:[#allocation20 + $0x4] sm:$0x1] %v1829
    %1859 = vst [vmem:[#allocation20 + $0x5] sm:$0x1] %v1830
    %1860 = vst [vmem:[#allocation20 + $0x6] sm:$0x1] %v1831
    %1861 = vst [vmem:[#allocation20 + $0x7] sm:$0x1] %v1832
    %1862 = vst [vmem:[#allocation20 + $0x8] sm:$0x1] %v1777
    %1863 = vst [vmem:[#allocation20 + $0x9] sm:$0x1] %v1833
    %1864 = vst [vmem:[#allocation20 + $0xa] sm:$0x1] %v1834
    %1865 = vst [vmem:[#allocation20 + $0xb] sm:$0x1] %v1835
    %1866 = vst [vmem:[#allocation20 + $0xc] sm:$0x1] %v1836
    %1867 = vst [vmem:[#allocation20 + $0xd] sm:$0x1] %v1837
    %1868 = vst [vmem:[#allocation20 + $0xe] sm:$0x1] %v1838
    %1869 = vst [vmem:[#allocation20 + $0xf] sm:$0x1] %v1839
    // Predicated region
    $region86: #{tpu_custom_call.1} parent=1 // pred_check
      %p1870 = pneg %p180
    $region87: #{tpu_custom_call.1} parent=1 // pred_check_branch
      %1872 = sbr.rel (%p1870) target = $region89
    $region88: #{tpu_custom_call.1} parent=1 // pred_region
      %v1873 = vld [vmem:[#allocation3] sm:$0xff]
      %v1874 = vld [vmem:[#allocation3 + $0x8] sm:$0xff]
      %v1875 = vld [vmem:[#allocation4] sm:$0xff]
      %v1876 = vld [vmem:[#allocation4 + $0x8] sm:$0xff]
      %v1877 = vlog2.pop %v1875
      %v1878 = vmul.f32 %v1877, 0.6931472
      %v1879 = vlog2.pop %v1876
      %v1880 = vmul.f32 %v1879, 0.6931472
      %v1881 = vadd.f32 %v1873, %v1878
      %v1882 = vadd.f32 %v1874, %v1880
      %v1885 = vrot.slane %v1881, 1
      %v1886 = vrot.slane %v1881, 2
      %v1887 = vrot.slane %v1881, 3
      %v1888 = vrot.slane %v1881, 4
      %v1889 = vrot.slane %v1881, 5
      %v1890 = vrot.slane %v1881, 6
      %v1891 = vrot.slane %v1881, 7
      %v1892 = vrot.slane %v1882, 1
      %v1893 = vrot.slane %v1882, 2
      %v1894 = vrot.slane %v1882, 3
      %v1895 = vrot.slane %v1882, 4
      %v1896 = vrot.slane %v1882, 5
      %v1897 = vrot.slane %v1882, 6
      %v1898 = vrot.slane %v1882, 7
      %v1899 = vld [vmem:[#allocation20] sm:$0x1]
      %v1900 = vld [vmem:[#allocation20 + $0x1] sm:$0x1]
      %v1901 = vld [vmem:[#allocation20 + $0x2] sm:$0x1]
      %v1902 = vld [vmem:[#allocation20 + $0x3] sm:$0x1]
      %v1903 = vld [vmem:[#allocation20 + $0x4] sm:$0x1]
      %v1904 = vld [vmem:[#allocation20 + $0x5] sm:$0x1]
      %v1905 = vld [vmem:[#allocation20 + $0x6] sm:$0x1]
      %v1906 = vld [vmem:[#allocation20 + $0x7] sm:$0x1]
      %v1907 = vld [vmem:[#allocation20 + $0x8] sm:$0x1]
      %v1908 = vld [vmem:[#allocation20 + $0x9] sm:$0x1]
      %v1909 = vld [vmem:[#allocation20 + $0xa] sm:$0x1]
      %v1910 = vld [vmem:[#allocation20 + $0xb] sm:$0x1]
      %v1911 = vld [vmem:[#allocation20 + $0xc] sm:$0x1]
      %v1912 = vld [vmem:[#allocation20 + $0xd] sm:$0x1]
      %v1913 = vld [vmem:[#allocation20 + $0xe] sm:$0x1]
      %v1914 = vld [vmem:[#allocation20 + $0xf] sm:$0x1]
      %1915 = vset.pattern.permute.xlu0 0
      %1916 = vperm.xlu0 %1915, %v1881
      %v1917 = vpop.permute.xlu0 %1916
      %v1919 = vperm.slane %v1917, 0
      %1920 = vset.pattern.permute.xlu0 0
      %1921 = vperm.xlu0 %1920, %v1885
      %v1922 = vpop.permute.xlu0 %1921
      %v1924 = vperm.slane %v1922, 0
      %1925 = vset.pattern.permute.xlu0 0
      %1926 = vperm.xlu0 %1925, %v1886
      %v1927 = vpop.permute.xlu0 %1926
      %v1929 = vperm.slane %v1927, 0
      %1930 = vset.pattern.permute.xlu0 0
      %1931 = vperm.xlu0 %1930, %v1887
      %v1932 = vpop.permute.xlu0 %1931
      %v1934 = vperm.slane %v1932, 0
      %1935 = vset.pattern.permute.xlu0 0
      %1936 = vperm.xlu0 %1935, %v1888
      %v1937 = vpop.permute.xlu0 %1936
      %v1939 = vperm.slane %v1937, 0
      %1940 = vset.pattern.permute.xlu0 0
      %1941 = vperm.xlu0 %1940, %v1889
      %v1942 = vpop.permute.xlu0 %1941
      %v1944 = vperm.slane %v1942, 0
      %1945 = vset.pattern.permute.xlu0 0
      %1946 = vperm.xlu0 %1945, %v1890
      %v1947 = vpop.permute.xlu0 %1946
      %v1949 = vperm.slane %v1947, 0
      %1950 = vset.pattern.permute.xlu0 0
      %1951 = vperm.xlu0 %1950, %v1891
      %v1952 = vpop.permute.xlu0 %1951
      %v1954 = vperm.slane %v1952, 0
      %1955 = vset.pattern.permute.xlu0 0
      %1956 = vperm.xlu0 %1955, %v1882
      %v1957 = vpop.permute.xlu0 %1956
      %v1959 = vperm.slane %v1957, 0
      %1960 = vset.pattern.permute.xlu0 0
      %1961 = vperm.xlu0 %1960, %v1892
      %v1962 = vpop.permute.xlu0 %1961
      %v1964 = vperm.slane %v1962, 0
      %1965 = vset.pattern.permute.xlu0 0
      %1966 = vperm.xlu0 %1965, %v1893
      %v1967 = vpop.permute.xlu0 %1966
      %v1969 = vperm.slane %v1967, 0
      %1970 = vset.pattern.permute.xlu0 0
      %1971 = vperm.xlu0 %1970, %v1894
      %v1972 = vpop.permute.xlu0 %1971
      %v1974 = vperm.slane %v1972, 0
      %1975 = vset.pattern.permute.xlu0 0
      %1976 = vperm.xlu0 %1975, %v1895
      %v1977 = vpop.permute.xlu0 %1976
      %v1979 = vperm.slane %v1977, 0
      %1980 = vset.pattern.permute.xlu0 0
      %1981 = vperm.xlu0 %1980, %v1896
      %v1982 = vpop.permute.xlu0 %1981
      %v1984 = vperm.slane %v1982, 0
      %1985 = vset.pattern.permute.xlu0 0
      %1986 = vperm.xlu0 %1985, %v1897
      %v1987 = vpop.permute.xlu0 %1986
      %v1989 = vperm.slane %v1987, 0
      %1990 = vset.pattern.permute.xlu0 0
      %1991 = vperm.xlu0 %1990, %v1898
      %v1992 = vpop.permute.xlu0 %1991
      %v1994 = vperm.slane %v1992, 0
      %v1995 = vsub.f32 %v1899, %v1919
      %v1996 = vsub.f32 %v1900, %v1924
      %v1997 = vsub.f32 %v1901, %v1929
      %v1998 = vsub.f32 %v1902, %v1934
      %v1999 = vsub.f32 %v1903, %v1939
      %v2000 = vsub.f32 %v1904, %v1944
      %v2001 = vsub.f32 %v1905, %v1949
      %v2002 = vsub.f32 %v1906, %v1954
      %v2003 = vsub.f32 %v1907, %v1959
      %v2004 = vsub.f32 %v1908, %v1964
      %v2005 = vsub.f32 %v1909, %v1969
      %v2006 = vsub.f32 %v1910, %v1974
      %v2007 = vsub.f32 %v1911, %v1979
      %v2008 = vsub.f32 %v1912, %v1984
      %v2009 = vsub.f32 %v1913, %v1989
      %v2010 = vsub.f32 %v1914, %v1994
      %2011 = vst [vmem:[#allocation20] sm:$0x1] %v1995
      %2012 = vst [vmem:[#allocation20 + $0x1] sm:$0x1] %v1996
      %2013 = vst [vmem:[#allocation20 + $0x2] sm:$0x1] %v1997
      %2014 = vst [vmem:[#allocation20 + $0x3] sm:$0x1] %v1998
      %2015 = vst [vmem:[#allocation20 + $0x4] sm:$0x1] %v1999
      %2016 = vst [vmem:[#allocation20 + $0x5] sm:$0x1] %v2000
      %2017 = vst [vmem:[#allocation20 + $0x6] sm:$0x1] %v2001
      %2018 = vst [vmem:[#allocation20 + $0x7] sm:$0x1] %v2002
      %2019 = vst [vmem:[#allocation20 + $0x8] sm:$0x1] %v2003
      %2020 = vst [vmem:[#allocation20 + $0x9] sm:$0x1] %v2004
      %2021 = vst [vmem:[#allocation20 + $0xa] sm:$0x1] %v2005
      %2022 = vst [vmem:[#allocation20 + $0xb] sm:$0x1] %v2006
      %2023 = vst [vmem:[#allocation20 + $0xc] sm:$0x1] %v2007
      %2024 = vst [vmem:[#allocation20 + $0xd] sm:$0x1] %v2008
      %2025 = vst [vmem:[#allocation20 + $0xe] sm:$0x1] %v2009
      %2026 = vst [vmem:[#allocation20 + $0xf] sm:$0x1] %v2010
    $region89: #{tpu_custom_call.1} parent=1 // pred_fallthru
      _
    // Predicated region
    $region90: #{tpu_custom_call.1} parent=1 // pred_check
      _
    $region91: #{tpu_custom_call.1} parent=1 // pred_check_branch
      %2028 = sbr.rel (0) target = $region93
    $region92: #{tpu_custom_call.1} parent=1 // pred_region
      %2030 = vsyncadd [#allocation7], 0
      %s2031 = sshll.u32 [#allocation20], 4
      %s2032 = int_to_ptr.vmem [resolvable:$true] %s2031
      %s2033 = sshll.u32 %s11, 4
      %s2034 = int_to_ptr.hbm [resolvable:$true] %s2033
      %2039 = dma.vmem_to_hbm [thread:$0]  %s2032, 256, %s2034, [#allocation7], 16, 16, 1
    $region93: #{tpu_custom_call.1} parent=1 // pred_fallthru
      _
    // Predicated region
    $region94: #{tpu_custom_call.1} parent=1 // pred_check
      _
    $region95: #{tpu_custom_call.1} parent=1 // pred_check_branch
      %2041 = sbr.rel (0) target = $region97
    $region96: #{tpu_custom_call.1} parent=1 // pred_region
      %2043 = vsyncadd [#allocation22], 0
      %s2044 = sshll.u32 [#allocation21], 4
      %s2045 = int_to_ptr.vmem [resolvable:$true] %s2044
      %s2046 = sshll.u32 %s12, 4
      %s2047 = int_to_ptr.hbm [resolvable:$true] %s2046
      %2052 = dma.vmem_to_hbm [thread:$0]  %s2045, 256, %s2047, [#allocation22], 128, 128, 8
    $region97: #{tpu_custom_call.1} parent=1 // pred_fallthru
      _
    // Predicated region
    $region98: #{tpu_custom_call.1} parent=1 // pred_check
      _
    $region99: #{tpu_custom_call.1} parent=1 // pred_check_branch
      %2054 = sbr.rel (0) target = $region101
    $region100: #{tpu_custom_call.1} parent=1 // pred_region
      %2056 = dma.done [#allocation7], 256
    $region101: #{tpu_custom_call.1} parent=1 // pred_fallthru
      _
    // Predicated region
    $region102: #{tpu_custom_call.1} parent=1 // pred_check
      _
    $region103: #{tpu_custom_call.1} parent=1 // pred_check_branch
      %2058 = sbr.rel (0) target = $region105
    $region104: #{tpu_custom_call.1} parent=1 // pred_region
      %2060 = dma.done [#allocation22], 256
    $region105: #{tpu_custom_call.1} parent=1 // pred_fallthru
      _
    %2061 = vsyncpa [#allocation6], 1
    %2062 = vsyncpa [#allocation9], 1
    %2063 = vsyncpa [#allocation12], 1
    %2064 = vsyncpa [#allocation15], 1
    %2065 = vsyncpa [#allocation18], 1
    %2066 = vsyncpa [#allocation7], 1
    %2067 = vsyncpa [#allocation22], 1

</llo_original>
